<compile_context>
chip_gen: v5e
topology: v5e:2x2
jax: 0.10.0
libtpu: 0.0.40
codegen_flags: <defaults>
</compile_context>

<pallas_src>
import functools
import math

import jax
import jax.numpy as jnp
from jax import lax
from jax.experimental import pallas as pl
from jax.experimental.pallas import tpu as pltpu


# ------------------------------ fused kernel ------------------------------- #

def _pool2(h):
    """MaxPool1d(kernel=2, stride=2) over the row (time) axis of a (T, C) tile.

    Uses 0/1 selection matmuls (even/odd row gather on the MXU) + a VPU max, so
    it stays entirely in vregs and lowers without strided/reshape relayouts.
    """
    T, C = h.shape
    To = T // 2
    out_idx = lax.broadcasted_iota(jnp.int32, (To, T), 0)
    in_idx = lax.broadcasted_iota(jnp.int32, (To, T), 1)
    sel_even = jnp.where(in_idx == 2 * out_idx, 1.0, 0.0).astype(jnp.float32)
    sel_odd = jnp.where(in_idx == 2 * out_idx + 1, 1.0, 0.0).astype(jnp.float32)
    even = jnp.dot(sel_even, h, preferred_element_type=jnp.float32)
    odd = jnp.dot(sel_odd, h, preferred_element_type=jnp.float32)
    return jnp.maximum(even, odd)


def cnn_fused_kernel(x_ref, w1_ref, b1_ref, w2_ref, b2_ref,
                     wd1_ref, bd1_ref, wd2_ref, bd2_ref, wd3_ref, bd3_ref,
                     o_ref, xpad1_ref, xpad2_ref, *, K, T, F, C, L):
    """One batch element per grid step; everything resident in VMEM."""
    # ---------------- conv1 (k=5, pad=2) as K shifted matmuls ---------------- #
    xpad1_ref[...] = jnp.zeros(xpad1_ref.shape, xpad1_ref.dtype)
    xpad1_ref[2:2 + T, :] = x_ref[0]                      # (T, F) into padded buffer
    acc1 = jnp.dot(xpad1_ref[0:T, :], w1_ref[0:F, :],
                   preferred_element_type=jnp.float32)
    for k in range(1, K):
        acc1 = acc1 + jnp.dot(xpad1_ref[k:k + T, :],
                              w1_ref[k * F:(k + 1) * F, :],
                              preferred_element_type=jnp.float32)
    h1 = jnp.maximum(acc1 + b1_ref[...], 0.0)             # (T, 32) ReLU
    p1 = _pool2(h1)                                       # (T//2, 32) maxpool
    # dropout -> identity (eval)

    # ---------------- conv2 (k=5, pad=2) ---------------- #
    T2 = T // 2
    xpad2_ref[...] = jnp.zeros(xpad2_ref.shape, xpad2_ref.dtype)
    xpad2_ref[2:2 + T2, :] = p1
    acc2 = jnp.dot(xpad2_ref[0:T2, :], w2_ref[0:C, :],
                   preferred_element_type=jnp.float32)
    for k in range(1, K):
        acc2 = acc2 + jnp.dot(xpad2_ref[k:k + T2, :],
                              w2_ref[k * C:(k + 1) * C, :],
                              preferred_element_type=jnp.float32)
    h2 = jnp.maximum(acc2 + b2_ref[...], 0.0)             # (T//2, 32)
    p2 = _pool2(h2)                                       # (L, 32), L = T//4
    # dropout -> identity (eval)

    # -------- dense_1: flatten absorbed into per-timestep matmul sum -------- #
    # wd1 rows are pre-permuted at init so time-major accumulation matches
    # torch's channel-major view(-1, C*L).
    d1 = bd1_ref[...]                                     # (1, 128)
    for l in range(L):
        d1 = d1 + jnp.dot(p2[l:l + 1, :], wd1_ref[l * C:(l + 1) * C, :],
                          preferred_element_type=jnp.float32)
    d1 = jnp.maximum(d1, 0.0)
    # -------- dense_2 + ReLU, dense_3 -------- #
    d2 = jnp.maximum(
        jnp.dot(d1, wd2_ref[...], preferred_element_type=jnp.float32) + bd2_ref[...],
        0.0)
    out = jnp.dot(d2, wd3_ref[...], preferred_element_type=jnp.float32) + bd3_ref[...]
    o_ref[0] = out.astype(o_ref.dtype)                    # only HBM store in the kernel


# ------------------------------ forward wrapper ----------------------------- #

def cnn_forward(emb_mat, params):
    """Forward pass of CNN(features, time_size, n_output). emb_mat: (B, T, F)."""
    B, T, F = emb_mat.shape
    assert T % 4 == 0, "time_size must be divisible by 4 (two stride-2 maxpools)"
    K, C = 5, 32
    L = T // 4
    H1 = params["wd1"].shape[1]          # 128
    H2 = params["wd2"].shape[1]          # 32
    n_out = params["wd3"].shape[1]

    kernel = functools.partial(cnn_fused_kernel, K=K, T=T, F=F, C=C, L=L)

    out = pl.pallas_call(
        kernel,
        out_shape=jax.ShapeDtypeStruct((B, 1, n_out), jnp.float32),
        grid=(B,),
        in_specs=[
            pl.BlockSpec((1, T, F), lambda b: (b, 0, 0)),      # input (per example)
            pl.BlockSpec((K * F, C), lambda b: (0, 0)),        # w1  (k-major, c_in)
            pl.BlockSpec((1, C), lambda b: (0, 0)),            # b1
            pl.BlockSpec((K * C, C), lambda b: (0, 0)),        # w2
            pl.BlockSpec((1, C), lambda b: (0, 0)),            # b2
            pl.BlockSpec((C * L, H1), lambda b: (0, 0)),       # wd1 (time-major rows)
            pl.BlockSpec((1, H1), lambda b: (0, 0)),           # bd1
            pl.BlockSpec((H1, H2), lambda b: (0, 0)),          # wd2
            pl.BlockSpec((1, H2), lambda b: (0, 0)),           # bd2
            pl.BlockSpec((H2, n_out), lambda b: (0, 0)),       # wd3
            pl.BlockSpec((1, n_out), lambda b: (0, 0)),        # bd3
        ],
        out_specs=pl.BlockSpec((1, 1, n_out), lambda b: (b, 0, 0)),
        scratch_shapes=[
            pltpu.VMEM((T + 4, F), jnp.float32),        # zero-padded conv1 input
            pltpu.VMEM((T // 2 + 4, C), jnp.float32),   # zero-padded conv2 input
        ],
        compiler_params=pltpu.CompilerParams(
            dimension_semantics=("parallel",)),
    )(
        emb_mat,
        params["w1"], params["b1"].reshape(1, C),
        params["w2"], params["b2"].reshape(1, C),
        params["wd1"], params["bd1"].reshape(1, H1),
        params["wd2"], params["bd2"].reshape(1, H2),
        params["wd3"], params["bd3"].reshape(1, n_out),
    )
    return out.reshape(B, n_out)


# --------------------------- pure-JAX reference ----------------------------- #

def cnn_forward_reference(emb_mat, params):
    """Independent pure-JAX reference (im2col conv, strided-slice pooling)."""
    B, T, _ = emb_mat.shape
    K = 5

    def conv_relu(x, w, b):
        t = x.shape[1]
        xp = jnp.pad(x, ((0, 0), (2, 2), (0, 0)))
        cols = jnp.concatenate([xp[:, k:k + t, :] for k in range(K)], axis=-1)
        return jnp.maximum(jnp.einsum("btk,kc->btc", cols, w) + b, 0.0)

    def pool(x):
        return jnp.maximum(x[:, 0::2, :], x[:, 1::2, :])

    h = pool(conv_relu(emb_mat, params["w1"], params["b1"]))
    h = pool(conv_relu(h, params["w2"], params["b2"]))
    flat = h.reshape(B, -1)                               # time-major flatten
    d1 = jnp.maximum(flat @ params["wd1"] + params["bd1"], 0.0)
    d2 = jnp.maximum(d1 @ params["wd2"] + params["bd2"], 0.0)
    return d2 @ params["wd3"] + params["bd3"]


# --------------------------- deterministic params --------------------------- #

def init_params(key, features, time_size, n_output):
    """PyTorch-default-style uniform(-1/sqrt(fan_in), 1/sqrt(fan_in)) init."""
    K, C = 5, 32
    L = (time_size // 2) // 2
    H1 = 128
    ks = jax.random.split(key, 10)

    def u(k, shape, fan_in):
        bound = 1.0 / math.sqrt(fan_in)
        return jax.random.uniform(k, shape, jnp.float32, -bound, bound)

    # conv weights generated torch-style (out, in, k), rearranged to the shifted-
    # matmul layout: rows ordered (k, c_in), columns = c_out.
    w1_t = u(ks[0], (C, features, K), features * K)
    w2_t = u(ks[2], (C, C, K), C * K)

    # dense_1 generated torch-style (out=128, in=C*L channel-major), then its
    # transposed rows are permuted channel-major -> time-major so the kernel's
    # plain time-major accumulation matches torch's view(-1, C*L) semantics.
    wd1_t = u(ks[4], (H1, C * L), C * L)
    wd1 = (jnp.transpose(wd1_t, (1, 0))          # (C*L, 128), rows c*L + l
           .reshape(C, L, H1)
           .transpose(1, 0, 2)                   # (L, C, 128)
           .reshape(L * C, H1))                  # rows l*C + c

    params = {
        "w1": jnp.transpose(w1_t, (2, 1, 0)).reshape(K * features, C),
        "b1": u(ks[1], (C,), features * K),
        "w2": jnp.transpose(w2_t, (2, 1, 0)).reshape(K * C, C),
        "b2": u(ks[3], (C,), C * K),
        "wd1": wd1,
        "bd1": u(ks[5], (H1,), C * L),
        "wd2": u(ks[6], (H1, 32), H1),
        "bd2": u(ks[7], (32,), H1),
        "wd3": u(ks[8], (32, n_output), 32),
        "bd3": u(ks[9], (n_output,), 32),
    }
    return params


# ---------------------------------- main ------------------------------------ #

if __name__ == "__main__":
    B, TIME, FEATURES, N_OUT = 2, 16, 4, 3

    key = jax.random.PRNGKey(0)
    pkey, xkey = jax.random.split(key)

    params = init_params(pkey, FEATURES, TIME, N_OUT)
    emb_mat = jax.random.normal(xkey, (B, TIME, FEATURES), jnp.float32)

    fwd = jax.jit(cnn_forward)
    out = jax.block_until_ready(fwd(emb_mat, params))

    assert out.shape == (B, N_OUT), out.shape
    assert out.dtype == jnp.float32
    assert bool(jnp.all(jnp.isfinite(out)))

    ref = cnn_forward_reference(emb_mat, params)
    assert jnp.allclose(out, ref, rtol=1e-4, atol=1e-4), float(
        jnp.max(jnp.abs(out - ref)))

    print("KERNEL_OK")
</pallas_src>

<mosaic_0001>
module attributes {stable_mosaic.version = 11 : i64} {
  func.func @cnn_fused_kernel(%arg0: i32, %arg1: memref<1x16x4xf32, #tpu.memory_space<vmem>>, %arg2: memref<20x32xf32, #tpu.memory_space<vmem>>, %arg3: memref<1x32xf32, #tpu.memory_space<vmem>>, %arg4: memref<160x32xf32, #tpu.memory_space<vmem>>, %arg5: memref<1x32xf32, #tpu.memory_space<vmem>>, %arg6: memref<128x128xf32, #tpu.memory_space<vmem>>, %arg7: memref<1x128xf32, #tpu.memory_space<vmem>>, %arg8: memref<128x32xf32, #tpu.memory_space<vmem>>, %arg9: memref<1x32xf32, #tpu.memory_space<vmem>>, %arg10: memref<32x3xf32, #tpu.memory_space<vmem>>, %arg11: memref<1x3xf32, #tpu.memory_space<vmem>>, %arg12: memref<1x1x3xf32, #tpu.memory_space<vmem>>, %arg13: memref<20x4xf32, #tpu.memory_space<vmem>>, %arg14: memref<12x32xf32, #tpu.memory_space<vmem>>) attributes {dimension_semantics = [#tpu.dimension_semantics<parallel>], iteration_bounds = array<i64: 2>, scalar_prefetch = 0 : i64, scratch_operands = 2 : i64, tpu.core_type = #tpu.core_type<tc>, window_params = [{transform_indices = @transform_0, window_bounds = array<i64: 1, 16, 4>}, {pipeline_mode = #tpu.pipeline_mode<synchronous>, transform_indices = @transform_1, window_bounds = array<i64: 20, 32>}, {pipeline_mode = #tpu.pipeline_mode<synchronous>, transform_indices = @transform_2, window_bounds = array<i64: 1, 32>}, {pipeline_mode = #tpu.pipeline_mode<synchronous>, transform_indices = @transform_3, window_bounds = array<i64: 160, 32>}, {pipeline_mode = #tpu.pipeline_mode<synchronous>, transform_indices = @transform_4, window_bounds = array<i64: 1, 32>}, {pipeline_mode = #tpu.pipeline_mode<synchronous>, transform_indices = @transform_5, window_bounds = array<i64: 128, 128>}, {pipeline_mode = #tpu.pipeline_mode<synchronous>, transform_indices = @transform_6, window_bounds = array<i64: 1, 128>}, {pipeline_mode = #tpu.pipeline_mode<synchronous>, transform_indices = @transform_7, window_bounds = array<i64: 128, 32>}, {pipeline_mode = #tpu.pipeline_mode<synchronous>, transform_indices = @transform_8, window_bounds = array<i64: 1, 32>}, {pipeline_mode = #tpu.pipeline_mode<synchronous>, transform_indices = @transform_9, window_bounds = array<i64: 32, 3>}, {pipeline_mode = #tpu.pipeline_mode<synchronous>, transform_indices = @transform_10, window_bounds = array<i64: 1, 3>}, {transform_indices = @transform_11, window_bounds = array<i64: 1, 1, 3>}]} {
    %cst = arith.constant 0.000000e+00 : f32
    %0 = vector.broadcast %cst : f32 to vector<20x4xf32>
    %c0 = arith.constant 0 : index
    %c0_0 = arith.constant 0 : index
    %1 = vector.load %arg13[%c0, %c0_0] : memref<20x4xf32, #tpu.memory_space<vmem>>, vector<20x4xf32>
    tpu.vector_store %arg13[%c0, %c0_0], %0 {strides = array<i32>} : memref<20x4xf32, #tpu.memory_space<vmem>>, vector<20x4xf32>,
    %c0_1 = arith.constant 0 : index
    %c0_2 = arith.constant 0 : index
    %c0_3 = arith.constant 0 : index
    %2 = vector.load %arg1[%c0_1, %c0_2, %c0_3] : memref<1x16x4xf32, #tpu.memory_space<vmem>>, vector<1x16x4xf32>
    %3 = vector.shape_cast %2 : vector<1x16x4xf32> to vector<16x4xf32>
    %c2 = arith.constant 2 : index
    %c0_4 = arith.constant 0 : index
    %4 = vector.load %arg13[%c2, %c0_4] : memref<20x4xf32, #tpu.memory_space<vmem>>, vector<16x4xf32>
    tpu.vector_store %arg13[%c2, %c0_4], %3 {strides = array<i32>} : memref<20x4xf32, #tpu.memory_space<vmem>>, vector<16x4xf32>,
    %c0_5 = arith.constant 0 : index
    %c0_6 = arith.constant 0 : index
    %5 = vector.load %arg13[%c0_5, %c0_6] : memref<20x4xf32, #tpu.memory_space<vmem>>, vector<16x4xf32>
    %c0_7 = arith.constant 0 : index
    %c0_8 = arith.constant 0 : index
    %6 = vector.load %arg2[%c0_7, %c0_8] : memref<20x32xf32, #tpu.memory_space<vmem>>, vector<4x32xf32>
    %cst_9 = arith.constant dense<0.000000e+00> : vector<16x32xf32>
    %7 = tpu.matmul %5, %6, %cst_9 {dimension_numbers = #tpu.dot_dimension_numbers<[1], [0], [0], [1], [0, 0, 1, 1], [], []>} : vector<16x4xf32>, vector<4x32xf32>, vector<16x32xf32> -> vector<16x32xf32>
    %c1 = arith.constant 1 : index
    %c0_10 = arith.constant 0 : index
    %8 = vector.load %arg13[%c1, %c0_10] : memref<20x4xf32, #tpu.memory_space<vmem>>, vector<16x4xf32>
    %c4 = arith.constant 4 : index
    %c0_11 = arith.constant 0 : index
    %9 = vector.load %arg2[%c4, %c0_11] : memref<20x32xf32, #tpu.memory_space<vmem>>, vector<4x32xf32>
    %cst_12 = arith.constant dense<0.000000e+00> : vector<16x32xf32>
    %10 = tpu.matmul %8, %9, %cst_12 {dimension_numbers = #tpu.dot_dimension_numbers<[1], [0], [0], [1], [0, 0, 1, 1], [], []>} : vector<16x4xf32>, vector<4x32xf32>, vector<16x32xf32> -> vector<16x32xf32>
    %11 = arith.addf %7, %10 : vector<16x32xf32>
    %c2_13 = arith.constant 2 : index
    %c0_14 = arith.constant 0 : index
    %12 = vector.load %arg13[%c2_13, %c0_14] : memref<20x4xf32, #tpu.memory_space<vmem>>, vector<16x4xf32>
    %c8 = arith.constant 8 : index
    %c0_15 = arith.constant 0 : index
    %13 = vector.load %arg2[%c8, %c0_15] : memref<20x32xf32, #tpu.memory_space<vmem>>, vector<4x32xf32>
    %cst_16 = arith.constant dense<0.000000e+00> : vector<16x32xf32>
    %14 = tpu.matmul %12, %13, %cst_16 {dimension_numbers = #tpu.dot_dimension_numbers<[1], [0], [0], [1], [0, 0, 1, 1], [], []>} : vector<16x4xf32>, vector<4x32xf32>, vector<16x32xf32> -> vector<16x32xf32>
    %15 = arith.addf %11, %14 : vector<16x32xf32>
    %c3 = arith.constant 3 : index
    %c0_17 = arith.constant 0 : index
    %16 = vector.load %arg13[%c3, %c0_17] : memref<20x4xf32, #tpu.memory_space<vmem>>, vector<16x4xf32>
    %c12 = arith.constant 12 : index
    %c0_18 = arith.constant 0 : index
    %17 = vector.load %arg2[%c12, %c0_18] : memref<20x32xf32, #tpu.memory_space<vmem>>, vector<4x32xf32>
    %cst_19 = arith.constant dense<0.000000e+00> : vector<16x32xf32>
    %18 = tpu.matmul %16, %17, %cst_19 {dimension_numbers = #tpu.dot_dimension_numbers<[1], [0], [0], [1], [0, 0, 1, 1], [], []>} : vector<16x4xf32>, vector<4x32xf32>, vector<16x32xf32> -> vector<16x32xf32>
    %19 = arith.addf %15, %18 : vector<16x32xf32>
    %c4_20 = arith.constant 4 : index
    %c0_21 = arith.constant 0 : index
    %20 = vector.load %arg13[%c4_20, %c0_21] : memref<20x4xf32, #tpu.memory_space<vmem>>, vector<16x4xf32>
    %c16 = arith.constant 16 : index
    %c0_22 = arith.constant 0 : index
    %21 = vector.load %arg2[%c16, %c0_22] : memref<20x32xf32, #tpu.memory_space<vmem>>, vector<4x32xf32>
    %cst_23 = arith.constant dense<0.000000e+00> : vector<16x32xf32>
    %22 = tpu.matmul %20, %21, %cst_23 {dimension_numbers = #tpu.dot_dimension_numbers<[1], [0], [0], [1], [0, 0, 1, 1], [], []>} : vector<16x4xf32>, vector<4x32xf32>, vector<16x32xf32> -> vector<16x32xf32>
    %23 = arith.addf %19, %22 : vector<16x32xf32>
    %c0_24 = arith.constant 0 : index
    %c0_25 = arith.constant 0 : index
    %24 = vector.load %arg3[%c0_24, %c0_25] : memref<1x32xf32, #tpu.memory_space<vmem>>, vector<1x32xf32>
    %25 = vector.broadcast %24 : vector<1x32xf32> to vector<16x32xf32>
    %26 = arith.addf %23, %25 : vector<16x32xf32>
    %cst_26 = arith.constant 0.000000e+00 : f32
    %27 = vector.broadcast %cst_26 : f32 to vector<16x32xf32>
    %28 = arith.maximumf %26, %27 : vector<16x32xf32>
    %29 = tpu.iota {dimensions = array<i32: 0>} : vector<8x16xi32>
    %30 = tpu.iota {dimensions = array<i32: 1>} : vector<8x16xi32>
    %c2_i32 = arith.constant 2 : i32
    %31 = vector.broadcast %c2_i32 : i32 to vector<8x16xi32>
    %32 = arith.muli %31, %29 : vector<8x16xi32>
    %33 = arith.cmpi eq, %30, %32 : vector<8x16xi32>
    %cst_27 = arith.constant 1.000000e+00 : f32
    %cst_28 = arith.constant 0.000000e+00 : f32
    %34 = vector.broadcast %cst_27 : f32 to vector<8x16xf32>
    %35 = vector.broadcast %cst_28 : f32 to vector<8x16xf32>
    %36 = arith.select %33, %34, %35 : vector<8x16xi1>, vector<8x16xf32>
    %c2_i32_29 = arith.constant 2 : i32
    %37 = vector.broadcast %c2_i32_29 : i32 to vector<8x16xi32>
    %38 = arith.muli %37, %29 : vector<8x16xi32>
    %c1_i32 = arith.constant 1 : i32
    %39 = vector.broadcast %c1_i32 : i32 to vector<8x16xi32>
    %40 = arith.addi %38, %39 : vector<8x16xi32>
    %41 = arith.cmpi eq, %30, %40 : vector<8x16xi32>
    %cst_30 = arith.constant 1.000000e+00 : f32
    %cst_31 = arith.constant 0.000000e+00 : f32
    %42 = vector.broadcast %cst_30 : f32 to vector<8x16xf32>
    %43 = vector.broadcast %cst_31 : f32 to vector<8x16xf32>
    %44 = arith.select %41, %42, %43 : vector<8x16xi1>, vector<8x16xf32>
    %cst_32 = arith.constant dense<0.000000e+00> : vector<8x32xf32>
    %45 = tpu.matmul %36, %28, %cst_32 {dimension_numbers = #tpu.dot_dimension_numbers<[1], [0], [0], [1], [0, 0, 1, 1], [], []>} : vector<8x16xf32>, vector<16x32xf32>, vector<8x32xf32> -> vector<8x32xf32>
    %cst_33 = arith.constant dense<0.000000e+00> : vector<8x32xf32>
    %46 = tpu.matmul %44, %28, %cst_33 {dimension_numbers = #tpu.dot_dimension_numbers<[1], [0], [0], [1], [0, 0, 1, 1], [], []>} : vector<8x16xf32>, vector<16x32xf32>, vector<8x32xf32> -> vector<8x32xf32>
    %47 = arith.maximumf %45, %46 : vector<8x32xf32>
    %cst_34 = arith.constant 0.000000e+00 : f32
    %48 = vector.broadcast %cst_34 : f32 to vector<12x32xf32>
    %c0_35 = arith.constant 0 : index
    %c0_36 = arith.constant 0 : index
    %49 = vector.load %arg14[%c0_35, %c0_36] : memref<12x32xf32, #tpu.memory_space<vmem>>, vector<12x32xf32>
    tpu.vector_store %arg14[%c0_35, %c0_36], %48 {strides = array<i32>} : memref<12x32xf32, #tpu.memory_space<vmem>>, vector<12x32xf32>,
    %c2_37 = arith.constant 2 : index
    %c0_38 = arith.constant 0 : index
    %50 = vector.load %arg14[%c2_37, %c0_38] : memref<12x32xf32, #tpu.memory_space<vmem>>, vector<8x32xf32>
    tpu.vector_store %arg14[%c2_37, %c0_38], %47 {strides = array<i32>} : memref<12x32xf32, #tpu.memory_space<vmem>>, vector<8x32xf32>,
    %c0_39 = arith.constant 0 : index
    %c0_40 = arith.constant 0 : index
    %51 = vector.load %arg14[%c0_39, %c0_40] : memref<12x32xf32, #tpu.memory_space<vmem>>, vector<8x32xf32>
    %c0_41 = arith.constant 0 : index
    %c0_42 = arith.constant 0 : index
    %52 = vector.load %arg4[%c0_41, %c0_42] : memref<160x32xf32, #tpu.memory_space<vmem>>, vector<32x32xf32>
    %cst_43 = arith.constant dense<0.000000e+00> : vector<8x32xf32>
    %53 = tpu.matmul %51, %52, %cst_43 {dimension_numbers = #tpu.dot_dimension_numbers<[1], [0], [0], [1], [0, 0, 1, 1], [], []>} : vector<8x32xf32>, vector<32x32xf32>, vector<8x32xf32> -> vector<8x32xf32>
    %c1_44 = arith.constant 1 : index
    %c0_45 = arith.constant 0 : index
    %54 = vector.load %arg14[%c1_44, %c0_45] : memref<12x32xf32, #tpu.memory_space<vmem>>, vector<8x32xf32>
    %c32 = arith.constant 32 : index
    %c0_46 = arith.constant 0 : index
    %55 = vector.load %arg4[%c32, %c0_46] : memref<160x32xf32, #tpu.memory_space<vmem>>, vector<32x32xf32>
    %cst_47 = arith.constant dense<0.000000e+00> : vector<8x32xf32>
    %56 = tpu.matmul %54, %55, %cst_47 {dimension_numbers = #tpu.dot_dimension_numbers<[1], [0], [0], [1], [0, 0, 1, 1], [], []>} : vector<8x32xf32>, vector<32x32xf32>, vector<8x32xf32> -> vector<8x32xf32>
    %57 = arith.addf %53, %56 : vector<8x32xf32>
    %c2_48 = arith.constant 2 : index
    %c0_49 = arith.constant 0 : index
    %58 = vector.load %arg14[%c2_48, %c0_49] : memref<12x32xf32, #tpu.memory_space<vmem>>, vector<8x32xf32>
    %c64 = arith.constant 64 : index
    %c0_50 = arith.constant 0 : index
    %59 = vector.load %arg4[%c64, %c0_50] : memref<160x32xf32, #tpu.memory_space<vmem>>, vector<32x32xf32>
    %cst_51 = arith.constant dense<0.000000e+00> : vector<8x32xf32>
    %60 = tpu.matmul %58, %59, %cst_51 {dimension_numbers = #tpu.dot_dimension_numbers<[1], [0], [0], [1], [0, 0, 1, 1], [], []>} : vector<8x32xf32>, vector<32x32xf32>, vector<8x32xf32> -> vector<8x32xf32>
    %61 = arith.addf %57, %60 : vector<8x32xf32>
    %c3_52 = arith.constant 3 : index
    %c0_53 = arith.constant 0 : index
    %62 = vector.load %arg14[%c3_52, %c0_53] : memref<12x32xf32, #tpu.memory_space<vmem>>, vector<8x32xf32>
    %c96 = arith.constant 96 : index
    %c0_54 = arith.constant 0 : index
    %63 = vector.load %arg4[%c96, %c0_54] : memref<160x32xf32, #tpu.memory_space<vmem>>, vector<32x32xf32>
    %cst_55 = arith.constant dense<0.000000e+00> : vector<8x32xf32>
    %64 = tpu.matmul %62, %63, %cst_55 {dimension_numbers = #tpu.dot_dimension_numbers<[1], [0], [0], [1], [0, 0, 1, 1], [], []>} : vector<8x32xf32>, vector<32x32xf32>, vector<8x32xf32> -> vector<8x32xf32>
    %65 = arith.addf %61, %64 : vector<8x32xf32>
    %c4_56 = arith.constant 4 : index
    %c0_57 = arith.constant 0 : index
    %66 = vector.load %arg14[%c4_56, %c0_57] : memref<12x32xf32, #tpu.memory_space<vmem>>, vector<8x32xf32>
    %c128 = arith.constant 128 : index
    %c0_58 = arith.constant 0 : index
    %67 = vector.load %arg4[%c128, %c0_58] : memref<160x32xf32, #tpu.memory_space<vmem>>, vector<32x32xf32>
    %cst_59 = arith.constant dense<0.000000e+00> : vector<8x32xf32>
    %68 = tpu.matmul %66, %67, %cst_59 {dimension_numbers = #tpu.dot_dimension_numbers<[1], [0], [0], [1], [0, 0, 1, 1], [], []>} : vector<8x32xf32>, vector<32x32xf32>, vector<8x32xf32> -> vector<8x32xf32>
    %69 = arith.addf %65, %68 : vector<8x32xf32>
    %c0_60 = arith.constant 0 : index
    %c0_61 = arith.constant 0 : index
    %70 = vector.load %arg5[%c0_60, %c0_61] : memref<1x32xf32, #tpu.memory_space<vmem>>, vector<1x32xf32>
    %71 = vector.broadcast %70 : vector<1x32xf32> to vector<8x32xf32>
    %72 = arith.addf %69, %71 : vector<8x32xf32>
    %cst_62 = arith.constant 0.000000e+00 : f32
    %73 = vector.broadcast %cst_62 : f32 to vector<8x32xf32>
    %74 = arith.maximumf %72, %73 : vector<8x32xf32>
    %75 = tpu.iota {dimensions = array<i32: 0>} : vector<4x8xi32>
    %76 = tpu.iota {dimensions = array<i32: 1>} : vector<4x8xi32>
    %c2_i32_63 = arith.constant 2 : i32
    %77 = vector.broadcast %c2_i32_63 : i32 to vector<4x8xi32>
    %78 = arith.muli %77, %75 : vector<4x8xi32>
    %79 = arith.cmpi eq, %76, %78 : vector<4x8xi32>
    %cst_64 = arith.constant 1.000000e+00 : f32
    %cst_65 = arith.constant 0.000000e+00 : f32
    %80 = vector.broadcast %cst_64 : f32 to vector<4x8xf32>
    %81 = vector.broadcast %cst_65 : f32 to vector<4x8xf32>
    %82 = arith.select %79, %80, %81 : vector<4x8xi1>, vector<4x8xf32>
    %c2_i32_66 = arith.constant 2 : i32
    %83 = vector.broadcast %c2_i32_66 : i32 to vector<4x8xi32>
    %84 = arith.muli %83, %75 : vector<4x8xi32>
    %c1_i32_67 = arith.constant 1 : i32
    %85 = vector.broadcast %c1_i32_67 : i32 to vector<4x8xi32>
    %86 = arith.addi %84, %85 : vector<4x8xi32>
    %87 = arith.cmpi eq, %76, %86 : vector<4x8xi32>
    %cst_68 = arith.constant 1.000000e+00 : f32
    %cst_69 = arith.constant 0.000000e+00 : f32
    %88 = vector.broadcast %cst_68 : f32 to vector<4x8xf32>
    %89 = vector.broadcast %cst_69 : f32 to vector<4x8xf32>
    %90 = arith.select %87, %88, %89 : vector<4x8xi1>, vector<4x8xf32>
    %cst_70 = arith.constant dense<0.000000e+00> : vector<4x32xf32>
    %91 = tpu.matmul %82, %74, %cst_70 {dimension_numbers = #tpu.dot_dimension_numbers<[1], [0], [0], [1], [0, 0, 1, 1], [], []>} : vector<4x8xf32>, vector<8x32xf32>, vector<4x32xf32> -> vector<4x32xf32>
    %cst_71 = arith.constant dense<0.000000e+00> : vector<4x32xf32>
    %92 = tpu.matmul %90, %74, %cst_71 {dimension_numbers = #tpu.dot_dimension_numbers<[1], [0], [0], [1], [0, 0, 1, 1], [], []>} : vector<4x8xf32>, vector<8x32xf32>, vector<4x32xf32> -> vector<4x32xf32>
    %93 = arith.maximumf %91, %92 : vector<4x32xf32>
    %c0_72 = arith.constant 0 : index
    %c0_73 = arith.constant 0 : index
    %94 = vector.load %arg7[%c0_72, %c0_73] : memref<1x128xf32, #tpu.memory_space<vmem>>, vector<1x128xf32>
    %95 = vector.extract_strided_slice %93 {offsets = [0, 0], sizes = [1, 32], strides = [1, 1]} : vector<4x32xf32> to vector<1x32xf32>
    %c0_74 = arith.constant 0 : index
    %c0_75 = arith.constant 0 : index
    %96 = vector.load %arg6[%c0_74, %c0_75] : memref<128x128xf32, #tpu.memory_space<vmem>>, vector<32x128xf32>
    %cst_76 = arith.constant dense<0.000000e+00> : vector<1x128xf32>
    %97 = tpu.matmul %95, %96, %cst_76 {dimension_numbers = #tpu.dot_dimension_numbers<[1], [0], [0], [1], [0, 0, 1, 1], [], []>} : vector<1x32xf32>, vector<32x128xf32>, vector<1x128xf32> -> vector<1x128xf32>
    %98 = arith.addf %94, %97 : vector<1x128xf32>
    %99 = vector.extract_strided_slice %93 {offsets = [1, 0], sizes = [1, 32], strides = [1, 1]} : vector<4x32xf32> to vector<1x32xf32>
    %c32_77 = arith.constant 32 : index
    %c0_78 = arith.constant 0 : index
    %100 = vector.load %arg6[%c32_77, %c0_78] : memref<128x128xf32, #tpu.memory_space<vmem>>, vector<32x128xf32>
    %cst_79 = arith.constant dense<0.000000e+00> : vector<1x128xf32>
    %101 = tpu.matmul %99, %100, %cst_79 {dimension_numbers = #tpu.dot_dimension_numbers<[1], [0], [0], [1], [0, 0, 1, 1], [], []>} : vector<1x32xf32>, vector<32x128xf32>, vector<1x128xf32> -> vector<1x128xf32>
    %102 = arith.addf %98, %101 : vector<1x128xf32>
    %103 = vector.extract_strided_slice %93 {offsets = [2, 0], sizes = [1, 32], strides = [1, 1]} : vector<4x32xf32> to vector<1x32xf32>
    %c64_80 = arith.constant 64 : index
    %c0_81 = arith.constant 0 : index
    %104 = vector.load %arg6[%c64_80, %c0_81] : memref<128x128xf32, #tpu.memory_space<vmem>>, vector<32x128xf32>
    %cst_82 = arith.constant dense<0.000000e+00> : vector<1x128xf32>
    %105 = tpu.matmul %103, %104, %cst_82 {dimension_numbers = #tpu.dot_dimension_numbers<[1], [0], [0], [1], [0, 0, 1, 1], [], []>} : vector<1x32xf32>, vector<32x128xf32>, vector<1x128xf32> -> vector<1x128xf32>
    %106 = arith.addf %102, %105 : vector<1x128xf32>
    %107 = vector.extract_strided_slice %93 {offsets = [3, 0], sizes = [1, 32], strides = [1, 1]} : vector<4x32xf32> to vector<1x32xf32>
    %c96_83 = arith.constant 96 : index
    %c0_84 = arith.constant 0 : index
    %108 = vector.load %arg6[%c96_83, %c0_84] : memref<128x128xf32, #tpu.memory_space<vmem>>, vector<32x128xf32>
    %cst_85 = arith.constant dense<0.000000e+00> : vector<1x128xf32>
    %109 = tpu.matmul %107, %108, %cst_85 {dimension_numbers = #tpu.dot_dimension_numbers<[1], [0], [0], [1], [0, 0, 1, 1], [], []>} : vector<1x32xf32>, vector<32x128xf32>, vector<1x128xf32> -> vector<1x128xf32>
    %110 = arith.addf %106, %109 : vector<1x128xf32>
    %cst_86 = arith.constant 0.000000e+00 : f32
    %111 = vector.broadcast %cst_86 : f32 to vector<1x128xf32>
    %112 = arith.maximumf %110, %111 : vector<1x128xf32>
    %c0_87 = arith.constant 0 : index
    %c0_88 = arith.constant 0 : index
    %113 = vector.load %arg8[%c0_87, %c0_88] : memref<128x32xf32, #tpu.memory_space<vmem>>, vector<128x32xf32>
    %cst_89 = arith.constant dense<0.000000e+00> : vector<1x32xf32>
    %114 = tpu.matmul %112, %113, %cst_89 {dimension_numbers = #tpu.dot_dimension_numbers<[1], [0], [0], [1], [0, 0, 1, 1], [], []>} : vector<1x128xf32>, vector<128x32xf32>, vector<1x32xf32> -> vector<1x32xf32>
    %c0_90 = arith.constant 0 : index
    %c0_91 = arith.constant 0 : index
    %115 = vector.load %arg9[%c0_90, %c0_91] : memref<1x32xf32, #tpu.memory_space<vmem>>, vector<1x32xf32>
    %116 = arith.addf %114, %115 : vector<1x32xf32>
    %cst_92 = arith.constant 0.000000e+00 : f32
    %117 = vector.broadcast %cst_92 : f32 to vector<1x32xf32>
    %118 = arith.maximumf %116, %117 : vector<1x32xf32>
    %c0_93 = arith.constant 0 : index
    %c0_94 = arith.constant 0 : index
    %119 = vector.load %arg10[%c0_93, %c0_94] : memref<32x3xf32, #tpu.memory_space<vmem>>, vector<32x3xf32>
    %cst_95 = arith.constant dense<0.000000e+00> : vector<1x3xf32>
    %120 = tpu.matmul %118, %119, %cst_95 {dimension_numbers = #tpu.dot_dimension_numbers<[1], [0], [0], [1], [0, 0, 1, 1], [], []>} : vector<1x32xf32>, vector<32x3xf32>, vector<1x3xf32> -> vector<1x3xf32>
    %c0_96 = arith.constant 0 : index
    %c0_97 = arith.constant 0 : index
    %121 = vector.load %arg11[%c0_96, %c0_97] : memref<1x3xf32, #tpu.memory_space<vmem>>, vector<1x3xf32>
    %122 = arith.addf %120, %121 : vector<1x3xf32>
    %c0_98 = arith.constant 0 : index
    %c0_99 = arith.constant 0 : index
    %c0_100 = arith.constant 0 : index
    %123 = vector.load %arg12[%c0_98, %c0_99, %c0_100] : memref<1x1x3xf32, #tpu.memory_space<vmem>>, vector<1x1x3xf32>
    %124 = vector.shape_cast %123 : vector<1x1x3xf32> to vector<1x3xf32>
    %125 = vector.shape_cast %122 : vector<1x3xf32> to vector<1x1x3xf32>
    tpu.vector_store %arg12[%c0_98, %c0_99, %c0_100], %125 {strides = array<i32>} : memref<1x1x3xf32, #tpu.memory_space<vmem>>, vector<1x1x3xf32>,
    return
  }
  func.func @transform_0(%arg0: i32) -> (i32, i32, i32) {
    %c0_i32 = arith.constant 0 : i32
    %c0_i32_0 = arith.constant 0 : i32
    %c0_i32_1 = arith.constant 0 : i32
    return %arg0, %c0_i32, %c0_i32_0 : i32, i32, i32
  }
  func.func @transform_1(%arg0: i32) -> (i32, i32) {
    %c0_i32 = arith.constant 0 : i32
    %c0_i32_0 = arith.constant 0 : i32
    %c0_i32_1 = arith.constant 0 : i32
    return %c0_i32, %c0_i32_0 : i32, i32
  }
  func.func @transform_2(%arg0: i32) -> (i32, i32) {
    %c0_i32 = arith.constant 0 : i32
    %c0_i32_0 = arith.constant 0 : i32
    %c0_i32_1 = arith.constant 0 : i32
    return %c0_i32, %c0_i32_0 : i32, i32
  }
  func.func @transform_3(%arg0: i32) -> (i32, i32) {
    %c0_i32 = arith.constant 0 : i32
    %c0_i32_0 = arith.constant 0 : i32
    %c0_i32_1 = arith.constant 0 : i32
    return %c0_i32, %c0_i32_0 : i32, i32
  }
  func.func @transform_4(%arg0: i32) -> (i32, i32) {
    %c0_i32 = arith.constant 0 : i32
    %c0_i32_0 = arith.constant 0 : i32
    %c0_i32_1 = arith.constant 0 : i32
    return %c0_i32, %c0_i32_0 : i32, i32
  }
  func.func @transform_5(%arg0: i32) -> (i32, i32) {
    %c0_i32 = arith.constant 0 : i32
    %c0_i32_0 = arith.constant 0 : i32
    %c0_i32_1 = arith.constant 0 : i32
    return %c0_i32, %c0_i32_0 : i32, i32
  }
  func.func @transform_6(%arg0: i32) -> (i32, i32) {
    %c0_i32 = arith.constant 0 : i32
    %c0_i32_0 = arith.constant 0 : i32
    %c0_i32_1 = arith.constant 0 : i32
    return %c0_i32, %c0_i32_0 : i32, i32
  }
  func.func @transform_7(%arg0: i32) -> (i32, i32) {
    %c0_i32 = arith.constant 0 : i32
    %c0_i32_0 = arith.constant 0 : i32
    %c0_i32_1 = arith.constant 0 : i32
    return %c0_i32, %c0_i32_0 : i32, i32
  }
  func.func @transform_8(%arg0: i32) -> (i32, i32) {
    %c0_i32 = arith.constant 0 : i32
    %c0_i32_0 = arith.constant 0 : i32
    %c0_i32_1 = arith.constant 0 : i32
    return %c0_i32, %c0_i32_0 : i32, i32
  }
  func.func @transform_9(%arg0: i32) -> (i32, i32) {
    %c0_i32 = arith.constant 0 : i32
    %c0_i32_0 = arith.constant 0 : i32
    %c0_i32_1 = arith.constant 0 : i32
    return %c0_i32, %c0_i32_0 : i32, i32
  }
  func.func @transform_10(%arg0: i32) -> (i32, i32) {
    %c0_i32 = arith.constant 0 : i32
    %c0_i32_0 = arith.constant 0 : i32
    %c0_i32_1 = arith.constant 0 : i32
    return %c0_i32, %c0_i32_0 : i32, i32
  }
  func.func @transform_11(%arg0: i32) -> (i32, i32, i32) {
    %c0_i32 = arith.constant 0 : i32
    %c0_i32_0 = arith.constant 0 : i32
    %c0_i32_1 = arith.constant 0 : i32
    return %arg0, %c0_i32, %c0_i32_0 : i32, i32, i32
  }
}

</mosaic_0001>

<llo_original>
// kernel: cnn_forward.1
$region0: #{cnn_forward.1}
  #allocation0 [shape = 'u32[]', space=smem, size = 0x4, offset = 0x4, fixed_abs, tag = 'smem constant byte address 0x4 - core index']
  #allocation1 [shape = 'u32[72,128]{1,0:T(1,128)}', space=vmem, size = 0x9000, scoped, tag = 'internal scratch']
  #allocation2 [shape = 'f32[20,4]{1,0:T(8,128)}', space=vmem, size = 0x3000, scoped, tag = 'scratch operand']
  #allocation3 [shape = 'f32[12,32]{1,0:T(8,128)}', space=vmem, size = 0x2000, scoped, tag = 'scratch operand']
  %s0 = inlined_call_operand.vmem [shape: f32[2,16,4], index: 0, kind: input, shape index: {}]
  %s1 = inlined_call_operand.vmem [shape: f32[20,32], index: 1, kind: input, shape index: {}]
  %s2 = inlined_call_operand.vmem [shape: f32[1,32], index: 2, kind: input, shape index: {}]
  %s3 = inlined_call_operand.vmem [shape: f32[160,32], index: 3, kind: input, shape index: {}]
  %s4 = inlined_call_operand.vmem [shape: f32[1,32], index: 4, kind: input, shape index: {}]
  %s5 = inlined_call_operand.vmem [shape: f32[128,128], index: 5, kind: input, shape index: {}]
  %s6 = inlined_call_operand.vmem [shape: f32[1,128], index: 6, kind: input, shape index: {}]
  %s7 = inlined_call_operand.vmem [shape: f32[128,32], index: 7, kind: input, shape index: {}]
  %s8 = inlined_call_operand.vmem [shape: f32[1,32], index: 8, kind: input, shape index: {}]
  %s9 = inlined_call_operand.vmem [shape: f32[32,3], index: 9, kind: input, shape index: {}]
  %s10 = inlined_call_operand.vmem [shape: f32[1,3], index: 10, kind: input, shape index: {}]
  %s11 = inlined_call_operand.hbm [shape: f32[2,1,3], index: 11, kind: output, shape index: {}]
  %s12 = sld [smem:[#allocation0]]
  $region77: #{cnn_forward.1} parent=0
    _
  %s14 = ssub.s32 1, %s12
  %s15 = scalar_select 0, %s14, %s12
  $region1: #{cnn_forward.1} parent=0
    #allocation4 [shape = 'u8[1024]{0}', space=vmem, size = 0x400, scoped, tag = 'output window, operand 0']
    #allocation5 [shape = 's32[2]{0}', space=sflag, size = 0x8, scoped, tag = 'scoped memory for cnn_forward.1']
    %16 = vsyncpa [#allocation5], 0
    %s17 = scalar_lea.sflag [#allocation5], 1
    %18 = vsyncpa %s17, 0
    loop: start=0, step=1, limit=4
    $region2: #{cnn_forward.1} parent=1 // loop_pre_header
      _
    $region3: #{cnn_forward.1} parent=1 // loop_header
      %s20 = sphi 0, %s24
      %p21 = scmp.ge.s32.totalorder %s20, 4
      %s30 = sphi 0, %s32
      %s33 = sphi 0, %s30
      %s34 = sphi 0, %s33
      %s50 = sphi 0, %s34
      %s54 = sphi 0, %s54
      %s56 = sphi 0, %s54
      %s57 = sphi 0, %s56
      %s71 = sphi 0, %s57
      %s75 = sphi 0, %s75
      %s77 = sphi 0, %s75
      %s78 = sphi 0, %s77
      %s92 = sphi 0, %s78
      %s96 = sphi 0, %s96
      %s98 = sphi 0, %s96
      %s99 = sphi 0, %s98
      %s113 = sphi 0, %s99
      %s117 = sphi 0, %s117
      %s119 = sphi 0, %s117
      %s120 = sphi 0, %s119
      %s134 = sphi 0, %s120
      %s138 = sphi 0, %s138
      %s140 = sphi 0, %s138
      %s141 = sphi 0, %s140
      %s155 = sphi 0, %s141
      %s159 = sphi 0, %s159
      %s161 = sphi 0, %s159
      %s162 = sphi 0, %s161
      %s176 = sphi 0, %s162
      %s180 = sphi 0, %s180
      %s182 = sphi 0, %s180
      %s183 = sphi 0, %s182
      %s197 = sphi 0, %s183
      %s201 = sphi 0, %s201
      %s203 = sphi 0, %s201
      %s204 = sphi 0, %s203
      %s218 = sphi 0, %s204
      %s222 = sphi 0, %s222
      %s224 = sphi 0, %s222
      %s225 = sphi 0, %s224
      %s239 = sphi 0, %s225
      %s243 = sphi 0, %s243
      %s245 = sphi 0, %s243
      %s246 = sphi 0, %s245
      %s260 = sphi 0, %s246
      %s266 = sphi 0, %s268
      %s269 = sphi 0, %s266
      %s270 = sphi 0, %s269
      %s286 = sphi 0, %s270
    $region4: #{cnn_forward.1} parent=1 // loop_header_branch
      %23 = sbr.rel (%p21) target = $region8
    $region5: #{cnn_forward.1} parent=1 // loop_body
      %s25 = ssub.s32 %s20, 1
      %s26 = ssub.s32 %s20, 2
      %s27 = sadd.s32 %s20, 1
      %s28 = ssub.s32 %s20, %s27
      %p29 = scmp.eq.s32.totalorder %s28, 0
      %s31 = sadd.s32 %s30, 1
      %s32 = scalar_select %p29, %s30, %s31
      %p35 = pneg %p29
      %p36 = scmp.eq.s32.totalorder %s20, 1
      %p37 = por %p35, %p36
      %p38 = scmp.ne.s32.totalorder %s30, %s33
      %p39 = scmp.eq.s32.totalorder %s20, 0
      %p40 = por %p38, %p39
      %p41 = scmp.ne.s32.totalorder %s30, %s33
      %p42 = scmp.eq.s32.totalorder %s25, 1
      %p43 = por %p41, %p42
      %p44 = scmp.ne.s32.totalorder %s33, %s34
      %p45 = scmp.eq.s32.totalorder %s25, 0
      %p46 = por %p44, %p45
      %p47 = scmp.ne.s32.totalorder %s33, %s34
      %p48 = scmp.eq.s32.totalorder %s26, 1
      %p49 = por %p47, %p48
      %p51 = scmp.ne.s32.totalorder %s34, %s50
      %p52 = scmp.eq.s32.totalorder %s26, 0
      %p53 = por %p51, %p52
      %s55 = sadd.s32 %s54, 1
      %p58 = scmp.eq.s32.totalorder %s20, 1
      %p59 = scmp.ne.s32.totalorder %s54, %s56
      %p60 = scmp.eq.s32.totalorder %s20, 0
      %p61 = por %p59, %p60
      %p62 = scmp.ne.s32.totalorder %s54, %s56
      %p63 = scmp.eq.s32.totalorder %s25, 1
      %p64 = por %p62, %p63
      %p65 = scmp.ne.s32.totalorder %s56, %s57
      %p66 = scmp.eq.s32.totalorder %s25, 0
      %p67 = por %p65, %p66
      %p68 = scmp.ne.s32.totalorder %s56, %s57
      %p69 = scmp.eq.s32.totalorder %s26, 1
      %p70 = por %p68, %p69
      %p72 = scmp.ne.s32.totalorder %s57, %s71
      %p73 = scmp.eq.s32.totalorder %s26, 0
      %p74 = por %p72, %p73
      %s76 = sadd.s32 %s75, 1
      %p79 = scmp.eq.s32.totalorder %s20, 1
      %p80 = scmp.ne.s32.totalorder %s75, %s77
      %p81 = scmp.eq.s32.totalorder %s20, 0
      %p82 = por %p80, %p81
      %p83 = scmp.ne.s32.totalorder %s75, %s77
      %p84 = scmp.eq.s32.totalorder %s25, 1
      %p85 = por %p83, %p84
      %p86 = scmp.ne.s32.totalorder %s77, %s78
      %p87 = scmp.eq.s32.totalorder %s25, 0
      %p88 = por %p86, %p87
      %p89 = scmp.ne.s32.totalorder %s77, %s78
      %p90 = scmp.eq.s32.totalorder %s26, 1
      %p91 = por %p89, %p90
      %p93 = scmp.ne.s32.totalorder %s78, %s92
      %p94 = scmp.eq.s32.totalorder %s26, 0
      %p95 = por %p93, %p94
      %s97 = sadd.s32 %s96, 1
      %p100 = scmp.eq.s32.totalorder %s20, 1
      %p101 = scmp.ne.s32.totalorder %s96, %s98
      %p102 = scmp.eq.s32.totalorder %s20, 0
      %p103 = por %p101, %p102
      %p104 = scmp.ne.s32.totalorder %s96, %s98
      %p105 = scmp.eq.s32.totalorder %s25, 1
      %p106 = por %p104, %p105
      %p107 = scmp.ne.s32.totalorder %s98, %s99
      %p108 = scmp.eq.s32.totalorder %s25, 0
      %p109 = por %p107, %p108
      %p110 = scmp.ne.s32.totalorder %s98, %s99
      %p111 = scmp.eq.s32.totalorder %s26, 1
      %p112 = por %p110, %p111
      %p114 = scmp.ne.s32.totalorder %s99, %s113
      %p115 = scmp.eq.s32.totalorder %s26, 0
      %p116 = por %p114, %p115
      %s118 = sadd.s32 %s117, 1
      %p121 = scmp.eq.s32.totalorder %s20, 1
      %p122 = scmp.ne.s32.totalorder %s117, %s119
      %p123 = scmp.eq.s32.totalorder %s20, 0
      %p124 = por %p122, %p123
      %p125 = scmp.ne.s32.totalorder %s117, %s119
      %p126 = scmp.eq.s32.totalorder %s25, 1
      %p127 = por %p125, %p126
      %p128 = scmp.ne.s32.totalorder %s119, %s120
      %p129 = scmp.eq.s32.totalorder %s25, 0
      %p130 = por %p128, %p129
      %p131 = scmp.ne.s32.totalorder %s119, %s120
      %p132 = scmp.eq.s32.totalorder %s26, 1
      %p133 = por %p131, %p132
      %p135 = scmp.ne.s32.totalorder %s120, %s134
      %p136 = scmp.eq.s32.totalorder %s26, 0
      %p137 = por %p135, %p136
      %s139 = sadd.s32 %s138, 1
      %p142 = scmp.eq.s32.totalorder %s20, 1
      %p143 = scmp.ne.s32.totalorder %s138, %s140
      %p144 = scmp.eq.s32.totalorder %s20, 0
      %p145 = por %p143, %p144
      %p146 = scmp.ne.s32.totalorder %s138, %s140
      %p147 = scmp.eq.s32.totalorder %s25, 1
      %p148 = por %p146, %p147
      %p149 = scmp.ne.s32.totalorder %s140, %s141
      %p150 = scmp.eq.s32.totalorder %s25, 0
      %p151 = por %p149, %p150
      %p152 = scmp.ne.s32.totalorder %s140, %s141
      %p153 = scmp.eq.s32.totalorder %s26, 1
      %p154 = por %p152, %p153
      %p156 = scmp.ne.s32.totalorder %s141, %s155
      %p157 = scmp.eq.s32.totalorder %s26, 0
      %p158 = por %p156, %p157
      %s160 = sadd.s32 %s159, 1
      %p163 = scmp.eq.s32.totalorder %s20, 1
      %p164 = scmp.ne.s32.totalorder %s159, %s161
      %p165 = scmp.eq.s32.totalorder %s20, 0
      %p166 = por %p164, %p165
      %p167 = scmp.ne.s32.totalorder %s159, %s161
      %p168 = scmp.eq.s32.totalorder %s25, 1
      %p169 = por %p167, %p168
      %p170 = scmp.ne.s32.totalorder %s161, %s162
      %p171 = scmp.eq.s32.totalorder %s25, 0
      %p172 = por %p170, %p171
      %p173 = scmp.ne.s32.totalorder %s161, %s162
      %p174 = scmp.eq.s32.totalorder %s26, 1
      %p175 = por %p173, %p174
      %p177 = scmp.ne.s32.totalorder %s162, %s176
      %p178 = scmp.eq.s32.totalorder %s26, 0
      %p179 = por %p177, %p178
      %s181 = sadd.s32 %s180, 1
      %p184 = scmp.eq.s32.totalorder %s20, 1
      %p185 = scmp.ne.s32.totalorder %s180, %s182
      %p186 = scmp.eq.s32.totalorder %s20, 0
      %p187 = por %p185, %p186
      %p188 = scmp.ne.s32.totalorder %s180, %s182
      %p189 = scmp.eq.s32.totalorder %s25, 1
      %p190 = por %p188, %p189
      %p191 = scmp.ne.s32.totalorder %s182, %s183
      %p192 = scmp.eq.s32.totalorder %s25, 0
      %p193 = por %p191, %p192
      %p194 = scmp.ne.s32.totalorder %s182, %s183
      %p195 = scmp.eq.s32.totalorder %s26, 1
      %p196 = por %p194, %p195
      %p198 = scmp.ne.s32.totalorder %s183, %s197
      %p199 = scmp.eq.s32.totalorder %s26, 0
      %p200 = por %p198, %p199
      %s202 = sadd.s32 %s201, 1
      %p205 = scmp.eq.s32.totalorder %s20, 1
      %p206 = scmp.ne.s32.totalorder %s201, %s203
      %p207 = scmp.eq.s32.totalorder %s20, 0
      %p208 = por %p206, %p207
      %p209 = scmp.ne.s32.totalorder %s201, %s203
      %p210 = scmp.eq.s32.totalorder %s25, 1
      %p211 = por %p209, %p210
      %p212 = scmp.ne.s32.totalorder %s203, %s204
      %p213 = scmp.eq.s32.totalorder %s25, 0
      %p214 = por %p212, %p213
      %p215 = scmp.ne.s32.totalorder %s203, %s204
      %p216 = scmp.eq.s32.totalorder %s26, 1
      %p217 = por %p215, %p216
      %p219 = scmp.ne.s32.totalorder %s204, %s218
      %p220 = scmp.eq.s32.totalorder %s26, 0
      %p221 = por %p219, %p220
      %s223 = sadd.s32 %s222, 1
      %p226 = scmp.eq.s32.totalorder %s20, 1
      %p227 = scmp.ne.s32.totalorder %s222, %s224
      %p228 = scmp.eq.s32.totalorder %s20, 0
      %p229 = por %p227, %p228
      %p230 = scmp.ne.s32.totalorder %s222, %s224
      %p231 = scmp.eq.s32.totalorder %s25, 1
      %p232 = por %p230, %p231
      %p233 = scmp.ne.s32.totalorder %s224, %s225
      %p234 = scmp.eq.s32.totalorder %s25, 0
      %p235 = por %p233, %p234
      %p236 = scmp.ne.s32.totalorder %s224, %s225
      %p237 = scmp.eq.s32.totalorder %s26, 1
      %p238 = por %p236, %p237
      %p240 = scmp.ne.s32.totalorder %s225, %s239
      %p241 = scmp.eq.s32.totalorder %s26, 0
      %p242 = por %p240, %p241
      %s244 = sadd.s32 %s243, 1
      %p247 = scmp.eq.s32.totalorder %s20, 1
      %p248 = scmp.ne.s32.totalorder %s243, %s245
      %p249 = scmp.eq.s32.totalorder %s20, 0
      %p250 = por %p248, %p249
      %p251 = scmp.ne.s32.totalorder %s243, %s245
      %p252 = scmp.eq.s32.totalorder %s25, 1
      %p253 = por %p251, %p252
      %p254 = scmp.ne.s32.totalorder %s245, %s246
      %p255 = scmp.eq.s32.totalorder %s25, 0
      %p256 = por %p254, %p255
      %p257 = scmp.ne.s32.totalorder %s245, %s246
      %p258 = scmp.eq.s32.totalorder %s26, 1
      %p259 = por %p257, %p258
      %p261 = scmp.ne.s32.totalorder %s246, %s260
      %p262 = scmp.eq.s32.totalorder %s26, 0
      %p263 = por %p261, %p262
      %s264 = ssub.s32 %s20, %s27
      %p265 = scmp.eq.s32.totalorder %s264, 0
      %s267 = sadd.s32 %s266, 1
      %s268 = scalar_select %p265, %s266, %s267
      %p271 = pneg %p265
      %p272 = scmp.eq.s32.totalorder %s20, 1
      %p273 = por %p271, %p272
      %p274 = scmp.ne.s32.totalorder %s266, %s269
      %p275 = scmp.eq.s32.totalorder %s20, 0
      %p276 = por %p274, %p275
      %p277 = scmp.ne.s32.totalorder %s266, %s269
      %p278 = scmp.eq.s32.totalorder %s25, 1
      %p279 = por %p277, %p278
      %p280 = scmp.ne.s32.totalorder %s269, %s270
      %p281 = scmp.eq.s32.totalorder %s25, 0
      %p282 = por %p280, %p281
      %p283 = scmp.ne.s32.totalorder %s269, %s270
      %p284 = scmp.eq.s32.totalorder %s26, 1
      %p285 = por %p283, %p284
      %p287 = scmp.ne.s32.totalorder %s270, %s286
      %p288 = scmp.eq.s32.totalorder %s26, 0
      %p289 = por %p287, %p288
      %p290 = scmp.le.s32.totalorder 1, %s20
      %p291 = scmp.lt.s32.totalorder %s20, 3
      %p292 = pnand %p290, %p291
      %p293 = pneg %p292
      // Predicated region
      $region9: #{cnn_forward.1} parent=5 // pred_check
        _
      $region10: #{cnn_forward.1} parent=5 // pred_check_branch
        %295 = sbr.rel (%p292) target = $region12
      $region11: #{cnn_forward.1} parent=5 // pred_region
        %s296 = ssub.s32 %s20, 1
        // Predicated region
        $region13: #{cnn_forward.1} parent=11 // pred_check
          %p297 = pneg %p67
        $region14: #{cnn_forward.1} parent=11 // pred_check_branch
          %299 = sbr.rel (%p297) target = $region16
        $region15: #{cnn_forward.1} parent=11 // pred_region
          _
        $region16: #{cnn_forward.1} parent=11 // pred_fallthru
          _
        // Predicated region
        $region17: #{cnn_forward.1} parent=11 // pred_check
          %p300 = pneg %p88
        $region18: #{cnn_forward.1} parent=11 // pred_check_branch
          %302 = sbr.rel (%p300) target = $region20
        $region19: #{cnn_forward.1} parent=11 // pred_region
          _
        $region20: #{cnn_forward.1} parent=11 // pred_fallthru
          _
        // Predicated region
        $region21: #{cnn_forward.1} parent=11 // pred_check
          %p303 = pneg %p109
        $region22: #{cnn_forward.1} parent=11 // pred_check_branch
          %305 = sbr.rel (%p303) target = $region24
        $region23: #{cnn_forward.1} parent=11 // pred_region
          _
        $region24: #{cnn_forward.1} parent=11 // pred_fallthru
          _
        // Predicated region
        $region25: #{cnn_forward.1} parent=11 // pred_check
          %p306 = pneg %p130
        $region26: #{cnn_forward.1} parent=11 // pred_check_branch
          %308 = sbr.rel (%p306) target = $region28
        $region27: #{cnn_forward.1} parent=11 // pred_region
          _
        $region28: #{cnn_forward.1} parent=11 // pred_fallthru
          _
        // Predicated region
        $region29: #{cnn_forward.1} parent=11 // pred_check
          %p309 = pneg %p151
        $region30: #{cnn_forward.1} parent=11 // pred_check_branch
          %311 = sbr.rel (%p309) target = $region32
        $region31: #{cnn_forward.1} parent=11 // pred_region
          _
        $region32: #{cnn_forward.1} parent=11 // pred_fallthru
          _
        // Predicated region
        $region33: #{cnn_forward.1} parent=11 // pred_check
          %p312 = pneg %p172
        $region34: #{cnn_forward.1} parent=11 // pred_check_branch
          %314 = sbr.rel (%p312) target = $region36
        $region35: #{cnn_forward.1} parent=11 // pred_region
          _
        $region36: #{cnn_forward.1} parent=11 // pred_fallthru
          _
        // Predicated region
        $region37: #{cnn_forward.1} parent=11 // pred_check
          %p315 = pneg %p193
        $region38: #{cnn_forward.1} parent=11 // pred_check_branch
          %317 = sbr.rel (%p315) target = $region40
        $region39: #{cnn_forward.1} parent=11 // pred_region
          _
        $region40: #{cnn_forward.1} parent=11 // pred_fallthru
          _
        // Predicated region
        $region41: #{cnn_forward.1} parent=11 // pred_check
          %p318 = pneg %p214
        $region42: #{cnn_forward.1} parent=11 // pred_check_branch
          %320 = sbr.rel (%p318) target = $region44
        $region43: #{cnn_forward.1} parent=11 // pred_region
          _
        $region44: #{cnn_forward.1} parent=11 // pred_fallthru
          _
        // Predicated region
        $region45: #{cnn_forward.1} parent=11 // pred_check
          %p321 = pneg %p235
        $region46: #{cnn_forward.1} parent=11 // pred_check_branch
          %323 = sbr.rel (%p321) target = $region48
        $region47: #{cnn_forward.1} parent=11 // pred_region
          _
        $region48: #{cnn_forward.1} parent=11 // pred_fallthru
          _
        // Predicated region
        $region49: #{cnn_forward.1} parent=11 // pred_check
          %p324 = pneg %p256
        $region50: #{cnn_forward.1} parent=11 // pred_check_branch
          %326 = sbr.rel (%p324) target = $region52
        $region51: #{cnn_forward.1} parent=11 // pred_region
          _
        $region52: #{cnn_forward.1} parent=11 // pred_fallthru
          _
      $region12: #{cnn_forward.1} parent=5 // pred_fallthru
        _
      %p327 = scmp.lt.s32.totalorder %s20, 2
      // Predicated region
      $region53: #{cnn_forward.1} parent=5 // pred_check
        %p328 = pneg %p327
      $region54: #{cnn_forward.1} parent=5 // pred_check_branch
        %330 = sbr.rel (%p328) target = $region56
      $region55: #{cnn_forward.1} parent=5 // pred_region
        // Predicated region
        $region57: #{cnn_forward.1} parent=55 // pred_check
          %p331 = pneg %p40
        $region58: #{cnn_forward.1} parent=55 // pred_check_branch
          %333 = sbr.rel (%p331) target = $region60
        $region59: #{cnn_forward.1} parent=55 // pred_region
          %p334 = scmp.lt.s32.totalorder %s20, 1
          %s335 = scalar_select %p334, %s20, 1
          %s336 = smul.addr %s335, 2
          %s337 = smul.addr %s336, 8
          %s338 = scalar_lea.vmem %s0, %s337
        $region60: #{cnn_forward.1} parent=55 // pred_fallthru
          _
      $region56: #{cnn_forward.1} parent=5 // pred_fallthru
        _
      %p339 = scmp.le.s32.totalorder 1, %s20
      %p340 = scmp.lt.s32.totalorder %s20, 3
      %p341 = pnand %p339, %p340
      %p342 = pneg %p341
      // Predicated region
      $region61: #{cnn_forward.1} parent=5 // pred_check
        _
      $region62: #{cnn_forward.1} parent=5 // pred_check_branch
        %344 = sbr.rel (%p341) target = $region64
      $region63: #{cnn_forward.1} parent=5 // pred_region
        %s345 = ssub.s32 %s20, 1
        %p346 = scmp.lt.s32.totalorder %s25, 1
        %s347 = scalar_select %p346, %s25, 1
        %s348 = smul.addr %s347, 2
        %s349 = smul.addr %s348, 8
        %s350 = scalar_lea.vmem %s0, %s349
        %p351 = pneg %p46
        %p352 = pneg %p43
        %p353 = pneg %p67
        %p354 = pneg %p64
        %p355 = pneg %p88
        %p356 = pneg %p85
        %p357 = pneg %p109
        %p358 = pneg %p106
        %p359 = pneg %p130
        %p360 = pneg %p127
        %p361 = pneg %p151
        %p362 = pneg %p148
        %p363 = pneg %p172
        %p364 = pneg %p169
        %p365 = pneg %p193
        %p366 = pneg %p190
        %p367 = pneg %p214
        %p368 = pneg %p211
        %p369 = pneg %p235
        %p370 = pneg %p232
        %p371 = pneg %p256
        %p372 = pneg %p253
        %p373 = pneg %p282
        %p374 = pneg %p279
        %s375 = sand.u32 %s269, 1
        %s376 = scalar_lea.sflag [#allocation5], %s375
        %s377 = sand.u32 %s269, 1
        %s378 = scalar_lea.vmem [#allocation4], %s377
        %p379 = scmp.lt.s32.totalorder %s25, 1
        %s380 = scalar_select %p379, %s25, 1
        %s381 = smul.addr %s380, 2
        %s382 = smul.addr %s381, 8
        %s383 = scalar_lea.vmem %s0, %s382
        %vm384 = vcmask 31744
        %385 = vst.msk [vmem:[#allocation2] sm:$0xff] %vm384, 0.0
        %386 = vst.msk [vmem:[#allocation2 + $0x8] sm:$0xff] %vm384, 0.0
        %vm387 = vcmask 27648
        %388 = vst.msk [vmem:[#allocation2 + $0x10] sm:$0xf] %vm387, 0.0
        %v389 = vld [vmem:[%s383] sm:$0xff]
        %v390 = vld [vmem:[%s383 + $0x8] sm:$0xff]
        %391 = vst.msk [vmem:[#allocation2 + $0x2] sm:$0xff] %vm384, %v389
        %392 = vst.msk [vmem:[#allocation2 + $0xa] sm:$0xff] %vm384, %v390
        %v393 = vld [vmem:[#allocation2] sm:$0xff]
        %v394 = vld [vmem:[#allocation2 + $0x8] sm:$0xff]
        %v395 = vld [vmem:[%s1] sm:$0xf]
        %v396 = vld [vmem:[#allocation2 + $0x1] sm:$0xff]
        %v397 = vld [vmem:[#allocation2 + $0x9] sm:$0xff]
        %v398 = vld [vmem:[%s1 + $0x4] sm:$0xf]
        %v400 = vsel %vm384, %v396, 0
        %v403 = vsel %vm384, %v397, 0
        %vm405 = vcmask 1043456
        %v407 = vsel %vm405, %v398, 0
        %409 = vmatpush.msra.mxu0 0.0
        %410 = vmatpush.msra.mxu0 0.0
        %411 = vmatpush.msra.mxu0 0.0
        %412 = vmatpush.msra.mxu0 0.0
        %413 = vmatpush.msra.mxu0 0.0
        %414 = vmatpush.msra.mxu0 0.0
        %415 = vmatpush.msra.mxu0 0.0
        %416 = vmatpush.msra.mxu0 0.0
        %417 = vmatpush.msra.mxu0 0.0
        %418 = vmatpush.msra.mxu0 0.0
        %419 = vmatpush.msra.mxu0 0.0
        %420 = vmatpush.msra.mxu0 0.0
        %421 = vmatpush.msra.mxu0 0.0
        %422 = vmatpush.msra.mxu0 0.0
        %423 = vmatpush.msra.mxu0 0.0
        %424 = vmatpush.msra.mxu0 %v407
        %425 = vmatmul.f32.gmra.mxu0 %v400
        %v426 = vpop.f32.mrf.mxu0
        %v427 = vadd.f32 0.0, %v426
        %428 = vmatmul.f32.gmra.mxu0 %v403
        %v429 = vpop.f32.mrf.mxu0
        %v430 = vadd.f32 0.0, %v429
        %431 = vdwg.mxu0
        %v433 = vsel %vm384, %v393, 0
        %v436 = vsel %vm384, %v394, 0
        %v439 = vsel %vm405, %v395, 0
        %441 = vmatpush.msra.mxu0 0.0
        %442 = vmatpush.msra.mxu0 0.0
        %443 = vmatpush.msra.mxu0 0.0
        %444 = vmatpush.msra.mxu0 0.0
        %445 = vmatpush.msra.mxu0 0.0
        %446 = vmatpush.msra.mxu0 0.0
        %447 = vmatpush.msra.mxu0 0.0
        %448 = vmatpush.msra.mxu0 0.0
        %449 = vmatpush.msra.mxu0 0.0
        %450 = vmatpush.msra.mxu0 0.0
        %451 = vmatpush.msra.mxu0 0.0
        %452 = vmatpush.msra.mxu0 0.0
        %453 = vmatpush.msra.mxu0 0.0
        %454 = vmatpush.msra.mxu0 0.0
        %455 = vmatpush.msra.mxu0 0.0
        %456 = vmatpush.msra.mxu0 %v439
        %457 = vmatmul.f32.gmra.mxu0 %v433
        %v458 = vpop.f32.mrf.mxu0
        %v459 = vadd.f32 %v427, %v458
        %460 = vmatmul.f32.gmra.mxu0 %v436
        %v461 = vpop.f32.mrf.mxu0
        %v462 = vadd.f32 %v430, %v461
        %463 = vdwg.mxu0
        %v464 = vld [vmem:[#allocation2 + $0x2] sm:$0xff]
        %v465 = vld [vmem:[#allocation2 + $0xa] sm:$0xff]
        %v466 = vld [vmem:[%s1 + $0x8] sm:$0xf]
        %v468 = vsel %vm384, %v464, 0
        %v471 = vsel %vm384, %v465, 0
        %v474 = vsel %vm405, %v466, 0
        %476 = vmatpush.msra.mxu0 0.0
        %477 = vmatpush.msra.mxu0 0.0
        %478 = vmatpush.msra.mxu0 0.0
        %479 = vmatpush.msra.mxu0 0.0
        %480 = vmatpush.msra.mxu0 0.0
        %481 = vmatpush.msra.mxu0 0.0
        %482 = vmatpush.msra.mxu0 0.0
        %483 = vmatpush.msra.mxu0 0.0
        %484 = vmatpush.msra.mxu0 0.0
        %485 = vmatpush.msra.mxu0 0.0
        %486 = vmatpush.msra.mxu0 0.0
        %487 = vmatpush.msra.mxu0 0.0
        %488 = vmatpush.msra.mxu0 0.0
        %489 = vmatpush.msra.mxu0 0.0
        %490 = vmatpush.msra.mxu0 0.0
        %491 = vmatpush.msra.mxu0 %v474
        %492 = vmatmul.f32.gmra.mxu0 %v468
        %v493 = vpop.f32.mrf.mxu0
        %v494 = vadd.f32 0.0, %v493
        %495 = vmatmul.f32.gmra.mxu0 %v471
        %v496 = vpop.f32.mrf.mxu0
        %v497 = vadd.f32 0.0, %v496
        %498 = vdwg.mxu0
        %v499 = vadd.f32 %v459, %v494
        %v500 = vadd.f32 %v462, %v497
        %v501 = vld [vmem:[#allocation2 + $0x3] sm:$0xff]
        %v502 = vld [vmem:[#allocation2 + $0xb] sm:$0xff]
        %v503 = vld [vmem:[%s1 + $0xc] sm:$0xf]
        %v505 = vsel %vm384, %v501, 0
        %v508 = vsel %vm384, %v502, 0
        %v511 = vsel %vm405, %v503, 0
        %513 = vmatpush.msra.mxu0 0.0
        %514 = vmatpush.msra.mxu0 0.0
        %515 = vmatpush.msra.mxu0 0.0
        %516 = vmatpush.msra.mxu0 0.0
        %517 = vmatpush.msra.mxu0 0.0
        %518 = vmatpush.msra.mxu0 0.0
        %519 = vmatpush.msra.mxu0 0.0
        %520 = vmatpush.msra.mxu0 0.0
        %521 = vmatpush.msra.mxu0 0.0
        %522 = vmatpush.msra.mxu0 0.0
        %523 = vmatpush.msra.mxu0 0.0
        %524 = vmatpush.msra.mxu0 0.0
        %525 = vmatpush.msra.mxu0 0.0
        %526 = vmatpush.msra.mxu0 0.0
        %527 = vmatpush.msra.mxu0 0.0
        %528 = vmatpush.msra.mxu0 %v511
        %529 = vmatmul.f32.gmra.mxu0 %v505
        %v530 = vpop.f32.mrf.mxu0
        %v531 = vadd.f32 0.0, %v530
        %532 = vmatmul.f32.gmra.mxu0 %v508
        %v533 = vpop.f32.mrf.mxu0
        %v534 = vadd.f32 0.0, %v533
        %535 = vdwg.mxu0
        %v536 = vadd.f32 %v499, %v531
        %v537 = vadd.f32 %v500, %v534
        %v538 = vld [vmem:[#allocation2 + $0x4] sm:$0xff]
        %v539 = vld [vmem:[#allocation2 + $0xc] sm:$0xff]
        %v540 = vld [vmem:[%s1 + $0x10] sm:$0xf]
        %v542 = vsel %vm384, %v538, 0
        %v545 = vsel %vm384, %v539, 0
        %v548 = vsel %vm405, %v540, 0
        %550 = vmatpush.msra.mxu0 0.0
        %551 = vmatpush.msra.mxu0 0.0
        %552 = vmatpush.msra.mxu0 0.0
        %553 = vmatpush.msra.mxu0 0.0
        %554 = vmatpush.msra.mxu0 0.0
        %555 = vmatpush.msra.mxu0 0.0
        %556 = vmatpush.msra.mxu0 0.0
        %557 = vmatpush.msra.mxu0 0.0
        %558 = vmatpush.msra.mxu0 0.0
        %559 = vmatpush.msra.mxu0 0.0
        %560 = vmatpush.msra.mxu0 0.0
        %561 = vmatpush.msra.mxu0 0.0
        %562 = vmatpush.msra.mxu0 0.0
        %563 = vmatpush.msra.mxu0 0.0
        %564 = vmatpush.msra.mxu0 0.0
        %565 = vmatpush.msra.mxu0 %v548
        %566 = vmatmul.f32.gmra.mxu0 %v542
        %v567 = vpop.f32.mrf.mxu0
        %v568 = vadd.f32 0.0, %v567
        %569 = vmatmul.f32.gmra.mxu0 %v545
        %v570 = vpop.f32.mrf.mxu0
        %v571 = vadd.f32 0.0, %v570
        %572 = vdwg.mxu0
        %v573 = vadd.f32 %v536, %v568
        %v574 = vadd.f32 %v537, %v571
        %v575 = vld [vmem:[%s2] sm:$0x1]
        %v577 = vperm.slane %v575, 0
        %v579 = vadd.f32 %v573, %v577
        %v580 = vadd.f32 %v574, %v577
        %v581 = vmax.f32 %v579, 0.0
        %v582 = vmax.f32 %v580, 0.0
        %v583 = vlaneseq
        %v584 = vshrl.u32 %v583, 7
        %v585 = vlaneseq
        %v586 = vand.u32 %v585, 127
        %v587 = vmul.u32 %v584, 2
        %vm588 = vcmp.eq.s32.totalorder %v586, %v587
        %v589 = vsel %vm588, 1.0, 0.0
        %v590 = vadd.s32 %v587, 1
        %vm591 = vcmp.eq.s32.totalorder %v586, %v590
        %v592 = vsel %vm591, 1.0, 0.0
        %vm593 = vcmask 130048
        %v595 = vsel %vm593, %v589, 0
        %597 = vmatpush.msra.mxu0 0.0
        %598 = vmatpush.msra.mxu0 0.0
        %599 = vmatpush.msra.mxu0 0.0
        %600 = vmatpush.msra.mxu0 0.0
        %601 = vmatpush.msra.mxu0 0.0
        %602 = vmatpush.msra.mxu0 0.0
        %603 = vmatpush.msra.mxu0 0.0
        %604 = vmatpush.msra.mxu0 0.0
        %605 = vmatpush.msra.mxu0 0.0
        %606 = vmatpush.msra.mxu0 0.0
        %607 = vmatpush.msra.mxu0 0.0
        %608 = vmatpush.msra.mxu0 0.0
        %609 = vmatpush.msra.mxu0 0.0
        %610 = vmatpush.msra.mxu0 0.0
        %611 = vmatpush.msra.mxu0 %v582
        %612 = vmatpush.msra.mxu0 %v581
        %613 = vmatmul.f32.gmra.mxu0 %v595
        %v614 = vpop.f32.mrf.mxu0
        %v615 = vadd.f32 0.0, %v614
        %616 = vdwg.mxu0
        %v618 = vsel %vm593, %v592, 0
        %620 = vmatpush.msra.mxu0 0.0
        %621 = vmatpush.msra.mxu0 0.0
        %622 = vmatpush.msra.mxu0 0.0
        %623 = vmatpush.msra.mxu0 0.0
        %624 = vmatpush.msra.mxu0 0.0
        %625 = vmatpush.msra.mxu0 0.0
        %626 = vmatpush.msra.mxu0 0.0
        %627 = vmatpush.msra.mxu0 0.0
        %628 = vmatpush.msra.mxu0 0.0
        %629 = vmatpush.msra.mxu0 0.0
        %630 = vmatpush.msra.mxu0 0.0
        %631 = vmatpush.msra.mxu0 0.0
        %632 = vmatpush.msra.mxu0 0.0
        %633 = vmatpush.msra.mxu0 0.0
        %634 = vmatpush.msra.mxu0 %v582
        %635 = vmatpush.msra.mxu0 %v581
        %636 = vmatmul.f32.gmra.mxu0 %v618
        %v637 = vpop.f32.mrf.mxu0
        %v638 = vadd.f32 0.0, %v637
        %639 = vdwg.mxu0
        %v640 = vmax.f32 %v615, %v638
        %vm641 = vcmask 261120
        %642 = vst.msk [vmem:[#allocation3] sm:$0xff] %vm641, 0.0
        %vm643 = vcmask 257024
        %644 = vst.msk [vmem:[#allocation3 + $0x8] sm:$0xf] %vm643, 0.0
        %645 = vst.msk [vmem:[#allocation3 + $0x2] sm:$0xff] %vm641, %v640
        %v646 = vld [vmem:[#allocation3] sm:$0xff]
        %v647 = vld [vmem:[%s3] sm:$0xff]
        %v648 = vld [vmem:[%s3 + $0x8] sm:$0xff]
        %v649 = vld [vmem:[%s3 + $0x10] sm:$0xff]
        %v650 = vld [vmem:[%s3 + $0x18] sm:$0xff]
        %v651 = vld [vmem:[#allocation3 + $0x1] sm:$0xff]
        %v652 = vld [vmem:[%s3 + $0x20] sm:$0xff]
        %v653 = vld [vmem:[%s3 + $0x28] sm:$0xff]
        %v654 = vld [vmem:[%s3 + $0x30] sm:$0xff]
        %v655 = vld [vmem:[%s3 + $0x38] sm:$0xff]
        %v657 = vsel %vm641, %v651, 0
        %659 = vmatpush.msra.mxu0 0.0
        %660 = vmatpush.msra.mxu0 0.0
        %661 = vmatpush.msra.mxu0 0.0
        %662 = vmatpush.msra.mxu0 0.0
        %663 = vmatpush.msra.mxu0 0.0
        %664 = vmatpush.msra.mxu0 0.0
        %665 = vmatpush.msra.mxu0 0.0
        %666 = vmatpush.msra.mxu0 0.0
        %667 = vmatpush.msra.mxu0 0.0
        %668 = vmatpush.msra.mxu0 0.0
        %669 = vmatpush.msra.mxu0 0.0
        %670 = vmatpush.msra.mxu0 0.0
        %671 = vmatpush.msra.mxu0 %v655
        %672 = vmatpush.msra.mxu0 %v654
        %673 = vmatpush.msra.mxu0 %v653
        %674 = vmatpush.msra.mxu0 %v652
        %675 = vmatmul.f32.gmra.mxu0 %v657
        %v676 = vpop.f32.mrf.mxu0
        %v677 = vadd.f32 0.0, %v676
        %678 = vdwg.mxu0
        %v680 = vsel %vm641, %v646, 0
        %682 = vmatpush.msra.mxu0 0.0
        %683 = vmatpush.msra.mxu0 0.0
        %684 = vmatpush.msra.mxu0 0.0
        %685 = vmatpush.msra.mxu0 0.0
        %686 = vmatpush.msra.mxu0 0.0
        %687 = vmatpush.msra.mxu0 0.0
        %688 = vmatpush.msra.mxu0 0.0
        %689 = vmatpush.msra.mxu0 0.0
        %690 = vmatpush.msra.mxu0 0.0
        %691 = vmatpush.msra.mxu0 0.0
        %692 = vmatpush.msra.mxu0 0.0
        %693 = vmatpush.msra.mxu0 0.0
        %694 = vmatpush.msra.mxu0 %v650
        %695 = vmatpush.msra.mxu0 %v649
        %696 = vmatpush.msra.mxu0 %v648
        %697 = vmatpush.msra.mxu0 %v647
        %698 = vmatmul.f32.gmra.mxu0 %v680
        %v699 = vpop.f32.mrf.mxu0
        %v700 = vadd.f32 %v677, %v699
        %701 = vdwg.mxu0
        %v702 = vld [vmem:[#allocation3 + $0x2] sm:$0xff]
        %v703 = vld [vmem:[%s3 + $0x40] sm:$0xff]
        %v704 = vld [vmem:[%s3 + $0x48] sm:$0xff]
        %v705 = vld [vmem:[%s3 + $0x50] sm:$0xff]
        %v706 = vld [vmem:[%s3 + $0x58] sm:$0xff]
        %v708 = vsel %vm641, %v702, 0
        %710 = vmatpush.msra.mxu0 0.0
        %711 = vmatpush.msra.mxu0 0.0
        %712 = vmatpush.msra.mxu0 0.0
        %713 = vmatpush.msra.mxu0 0.0
        %714 = vmatpush.msra.mxu0 0.0
        %715 = vmatpush.msra.mxu0 0.0
        %716 = vmatpush.msra.mxu0 0.0
        %717 = vmatpush.msra.mxu0 0.0
        %718 = vmatpush.msra.mxu0 0.0
        %719 = vmatpush.msra.mxu0 0.0
        %720 = vmatpush.msra.mxu0 0.0
        %721 = vmatpush.msra.mxu0 0.0
        %722 = vmatpush.msra.mxu0 %v706
        %723 = vmatpush.msra.mxu0 %v705
        %724 = vmatpush.msra.mxu0 %v704
        %725 = vmatpush.msra.mxu0 %v703
        %726 = vmatmul.f32.gmra.mxu0 %v708
        %v727 = vpop.f32.mrf.mxu0
        %v728 = vadd.f32 0.0, %v727
        %729 = vdwg.mxu0
        %v730 = vadd.f32 %v700, %v728
        %v731 = vld [vmem:[#allocation3 + $0x3] sm:$0xff]
        %v732 = vld [vmem:[%s3 + $0x60] sm:$0xff]
        %v733 = vld [vmem:[%s3 + $0x68] sm:$0xff]
        %v734 = vld [vmem:[%s3 + $0x70] sm:$0xff]
        %v735 = vld [vmem:[%s3 + $0x78] sm:$0xff]
        %v737 = vsel %vm641, %v731, 0
        %739 = vmatpush.msra.mxu0 0.0
        %740 = vmatpush.msra.mxu0 0.0
        %741 = vmatpush.msra.mxu0 0.0
        %742 = vmatpush.msra.mxu0 0.0
        %743 = vmatpush.msra.mxu0 0.0
        %744 = vmatpush.msra.mxu0 0.0
        %745 = vmatpush.msra.mxu0 0.0
        %746 = vmatpush.msra.mxu0 0.0
        %747 = vmatpush.msra.mxu0 0.0
        %748 = vmatpush.msra.mxu0 0.0
        %749 = vmatpush.msra.mxu0 0.0
        %750 = vmatpush.msra.mxu0 0.0
        %751 = vmatpush.msra.mxu0 %v735
        %752 = vmatpush.msra.mxu0 %v734
        %753 = vmatpush.msra.mxu0 %v733
        %754 = vmatpush.msra.mxu0 %v732
        %755 = vmatmul.f32.gmra.mxu0 %v737
        %v756 = vpop.f32.mrf.mxu0
        %v757 = vadd.f32 0.0, %v756
        %758 = vdwg.mxu0
        %v759 = vadd.f32 %v730, %v757
        %v760 = vld [vmem:[#allocation3 + $0x4] sm:$0xff]
        %v761 = vld [vmem:[%s3 + $0x80] sm:$0xff]
        %v762 = vld [vmem:[%s3 + $0x88] sm:$0xff]
        %v763 = vld [vmem:[%s3 + $0x90] sm:$0xff]
        %v764 = vld [vmem:[%s3 + $0x98] sm:$0xff]
        %v766 = vsel %vm641, %v760, 0
        %768 = vmatpush.msra.mxu0 0.0
        %769 = vmatpush.msra.mxu0 0.0
        %770 = vmatpush.msra.mxu0 0.0
        %771 = vmatpush.msra.mxu0 0.0
        %772 = vmatpush.msra.mxu0 0.0
        %773 = vmatpush.msra.mxu0 0.0
        %774 = vmatpush.msra.mxu0 0.0
        %775 = vmatpush.msra.mxu0 0.0
        %776 = vmatpush.msra.mxu0 0.0
        %777 = vmatpush.msra.mxu0 0.0
        %778 = vmatpush.msra.mxu0 0.0
        %779 = vmatpush.msra.mxu0 0.0
        %780 = vmatpush.msra.mxu0 %v764
        %781 = vmatpush.msra.mxu0 %v763
        %782 = vmatpush.msra.mxu0 %v762
        %783 = vmatpush.msra.mxu0 %v761
        %784 = vmatmul.f32.gmra.mxu0 %v766
        %v785 = vpop.f32.mrf.mxu0
        %v786 = vadd.f32 0.0, %v785
        %787 = vdwg.mxu0
        %v788 = vadd.f32 %v759, %v786
        %v789 = vld [vmem:[%s4] sm:$0x1]
        %v791 = vperm.slane %v789, 0
        %v793 = vadd.f32 %v788, %v791
        %v794 = vmax.f32 %v793, 0.0
        %vm795 = vcmask 64512
        %v796 = vsel %vm795, %v589, 0
        %798 = vmatpush.msra.mxu0 0.0
        %799 = vmatpush.msra.mxu0 0.0
        %800 = vmatpush.msra.mxu0 0.0
        %801 = vmatpush.msra.mxu0 0.0
        %802 = vmatpush.msra.mxu0 0.0
        %803 = vmatpush.msra.mxu0 0.0
        %804 = vmatpush.msra.mxu0 0.0
        %805 = vmatpush.msra.mxu0 0.0
        %806 = vmatpush.msra.mxu0 0.0
        %807 = vmatpush.msra.mxu0 0.0
        %808 = vmatpush.msra.mxu0 0.0
        %809 = vmatpush.msra.mxu0 0.0
        %810 = vmatpush.msra.mxu0 0.0
        %811 = vmatpush.msra.mxu0 0.0
        %812 = vmatpush.msra.mxu0 0.0
        %813 = vmatpush.msra.mxu0 %v794
        %814 = vmatmul.f32.gmra.mxu0 %v796
        %v815 = vpop.f32.mrf.mxu0
        %v816 = vadd.f32 0.0, %v815
        %817 = vdwg.mxu0
        %v818 = vsel %vm795, %v592, 0
        %820 = vmatpush.msra.mxu0 0.0
        %821 = vmatpush.msra.mxu0 0.0
        %822 = vmatpush.msra.mxu0 0.0
        %823 = vmatpush.msra.mxu0 0.0
        %824 = vmatpush.msra.mxu0 0.0
        %825 = vmatpush.msra.mxu0 0.0
        %826 = vmatpush.msra.mxu0 0.0
        %827 = vmatpush.msra.mxu0 0.0
        %828 = vmatpush.msra.mxu0 0.0
        %829 = vmatpush.msra.mxu0 0.0
        %830 = vmatpush.msra.mxu0 0.0
        %831 = vmatpush.msra.mxu0 0.0
        %832 = vmatpush.msra.mxu0 0.0
        %833 = vmatpush.msra.mxu0 0.0
        %834 = vmatpush.msra.mxu0 0.0
        %835 = vmatpush.msra.mxu0 %v794
        %836 = vmatmul.f32.gmra.mxu0 %v818
        %v837 = vpop.f32.mrf.mxu0
        %v838 = vadd.f32 0.0, %v837
        %839 = vdwg.mxu0
        %v840 = vmax.f32 %v816, %v838
        %v841 = vld [vmem:[%s6] sm:$0x1]
        %v842 = vld [vmem:[%s5] sm:$0xff]
        %v843 = vld [vmem:[%s5 + $0x8] sm:$0xff]
        %v844 = vld [vmem:[%s5 + $0x10] sm:$0xff]
        %v845 = vld [vmem:[%s5 + $0x18] sm:$0xff]
        %v847 = vsel %vm641, %v840, 0
        %849 = vmatpush.msra.mxu0 0.0
        %850 = vmatpush.msra.mxu0 0.0
        %851 = vmatpush.msra.mxu0 0.0
        %852 = vmatpush.msra.mxu0 0.0
        %853 = vmatpush.msra.mxu0 0.0
        %854 = vmatpush.msra.mxu0 0.0
        %855 = vmatpush.msra.mxu0 0.0
        %856 = vmatpush.msra.mxu0 0.0
        %857 = vmatpush.msra.mxu0 0.0
        %858 = vmatpush.msra.mxu0 0.0
        %859 = vmatpush.msra.mxu0 0.0
        %860 = vmatpush.msra.mxu0 0.0
        %861 = vmatpush.msra.mxu0 %v845
        %862 = vmatpush.msra.mxu0 %v844
        %863 = vmatpush.msra.mxu0 %v843
        %864 = vmatpush.msra.mxu0 %v842
        %865 = vmatmul.f32.gmra.mxu0 %v847
        %v866 = vpop.f32.mrf.mxu0
        %v867 = vadd.f32 0.0, %v866
        %868 = vdwg.mxu0
        %v869 = vadd.f32 %v841, %v867
        %v870 = vld [vmem:[%s5 + $0x20] sm:$0xff]
        %v871 = vld [vmem:[%s5 + $0x28] sm:$0xff]
        %v872 = vld [vmem:[%s5 + $0x30] sm:$0xff]
        %v873 = vld [vmem:[%s5 + $0x38] sm:$0xff]
        %v874 = vrot.slane %v840, 1
        %v875 = vsel %vm641, %v874, 0
        %877 = vmatpush.msra.mxu0 0.0
        %878 = vmatpush.msra.mxu0 0.0
        %879 = vmatpush.msra.mxu0 0.0
        %880 = vmatpush.msra.mxu0 0.0
        %881 = vmatpush.msra.mxu0 0.0
        %882 = vmatpush.msra.mxu0 0.0
        %883 = vmatpush.msra.mxu0 0.0
        %884 = vmatpush.msra.mxu0 0.0
        %885 = vmatpush.msra.mxu0 0.0
        %886 = vmatpush.msra.mxu0 0.0
        %887 = vmatpush.msra.mxu0 0.0
        %888 = vmatpush.msra.mxu0 0.0
        %889 = vmatpush.msra.mxu0 %v873
        %890 = vmatpush.msra.mxu0 %v872
        %891 = vmatpush.msra.mxu0 %v871
        %892 = vmatpush.msra.mxu0 %v870
        %893 = vmatmul.f32.gmra.mxu0 %v875
        %v894 = vpop.f32.mrf.mxu0
        %v895 = vadd.f32 0.0, %v894
        %896 = vdwg.mxu0
        %v897 = vadd.f32 %v869, %v895
        %v898 = vld [vmem:[%s5 + $0x40] sm:$0xff]
        %v899 = vld [vmem:[%s5 + $0x48] sm:$0xff]
        %v900 = vld [vmem:[%s5 + $0x50] sm:$0xff]
        %v901 = vld [vmem:[%s5 + $0x58] sm:$0xff]
        %v902 = vrot.slane %v840, 2
        %v903 = vsel %vm641, %v902, 0
        %905 = vmatpush.msra.mxu0 0.0
        %906 = vmatpush.msra.mxu0 0.0
        %907 = vmatpush.msra.mxu0 0.0
        %908 = vmatpush.msra.mxu0 0.0
        %909 = vmatpush.msra.mxu0 0.0
        %910 = vmatpush.msra.mxu0 0.0
        %911 = vmatpush.msra.mxu0 0.0
        %912 = vmatpush.msra.mxu0 0.0
        %913 = vmatpush.msra.mxu0 0.0
        %914 = vmatpush.msra.mxu0 0.0
        %915 = vmatpush.msra.mxu0 0.0
        %916 = vmatpush.msra.mxu0 0.0
        %917 = vmatpush.msra.mxu0 %v901
        %918 = vmatpush.msra.mxu0 %v900
        %919 = vmatpush.msra.mxu0 %v899
        %920 = vmatpush.msra.mxu0 %v898
        %921 = vmatmul.f32.gmra.mxu0 %v903
        %v922 = vpop.f32.mrf.mxu0
        %v923 = vadd.f32 0.0, %v922
        %924 = vdwg.mxu0
        %v925 = vadd.f32 %v897, %v923
        %v926 = vld [vmem:[%s5 + $0x60] sm:$0xff]
        %v927 = vld [vmem:[%s5 + $0x68] sm:$0xff]
        %v928 = vld [vmem:[%s5 + $0x70] sm:$0xff]
        %v929 = vld [vmem:[%s5 + $0x78] sm:$0xff]
        %v930 = vrot.slane %v840, 3
        %v931 = vsel %vm641, %v930, 0
        %933 = vmatpush.msra.mxu0 0.0
        %934 = vmatpush.msra.mxu0 0.0
        %935 = vmatpush.msra.mxu0 0.0
        %936 = vmatpush.msra.mxu0 0.0
        %937 = vmatpush.msra.mxu0 0.0
        %938 = vmatpush.msra.mxu0 0.0
        %939 = vmatpush.msra.mxu0 0.0
        %940 = vmatpush.msra.mxu0 0.0
        %941 = vmatpush.msra.mxu0 0.0
        %942 = vmatpush.msra.mxu0 0.0
        %943 = vmatpush.msra.mxu0 0.0
        %944 = vmatpush.msra.mxu0 0.0
        %945 = vmatpush.msra.mxu0 %v929
        %946 = vmatpush.msra.mxu0 %v928
        %947 = vmatpush.msra.mxu0 %v927
        %948 = vmatpush.msra.mxu0 %v926
        %949 = vmatmul.f32.gmra.mxu0 %v931
        %v950 = vpop.f32.mrf.mxu0
        %v951 = vadd.f32 0.0, %v950
        %952 = vdwg.mxu0
        %v953 = vadd.f32 %v925, %v951
        %v954 = vmax.f32 %v953, 0.0
        %v955 = vld [vmem:[%s7] sm:$0xff]
        %v956 = vld [vmem:[%s7 + $0x8] sm:$0xff]
        %v957 = vld [vmem:[%s7 + $0x10] sm:$0xff]
        %v958 = vld [vmem:[%s7 + $0x18] sm:$0xff]
        %v959 = vld [vmem:[%s7 + $0x20] sm:$0xff]
        %v960 = vld [vmem:[%s7 + $0x28] sm:$0xff]
        %v961 = vld [vmem:[%s7 + $0x30] sm:$0xff]
        %v962 = vld [vmem:[%s7 + $0x38] sm:$0xff]
        %v963 = vld [vmem:[%s7 + $0x40] sm:$0xff]
        %v964 = vld [vmem:[%s7 + $0x48] sm:$0xff]
        %v965 = vld [vmem:[%s7 + $0x50] sm:$0xff]
        %v966 = vld [vmem:[%s7 + $0x58] sm:$0xff]
        %v967 = vld [vmem:[%s7 + $0x60] sm:$0xff]
        %v968 = vld [vmem:[%s7 + $0x68] sm:$0xff]
        %v969 = vld [vmem:[%s7 + $0x70] sm:$0xff]
        %v970 = vld [vmem:[%s7 + $0x78] sm:$0xff]
        %v971 = vld [vmem:[%s8] sm:$0x1]
        %972 = vmatpush.msra.mxu0 %v970
        %973 = vmatpush.msra.mxu0 %v969
        %974 = vmatpush.msra.mxu0 %v968
        %975 = vmatpush.msra.mxu0 %v967
        %976 = vmatpush.msra.mxu0 %v966
        %977 = vmatpush.msra.mxu0 %v965
        %978 = vmatpush.msra.mxu0 %v964
        %979 = vmatpush.msra.mxu0 %v963
        %980 = vmatpush.msra.mxu0 %v962
        %981 = vmatpush.msra.mxu0 %v961
        %982 = vmatpush.msra.mxu0 %v960
        %983 = vmatpush.msra.mxu0 %v959
        %984 = vmatpush.msra.mxu0 %v958
        %985 = vmatpush.msra.mxu0 %v957
        %986 = vmatpush.msra.mxu0 %v956
        %987 = vmatpush.msra.mxu0 %v955
        %988 = vmatmul.f32.gmra.mxu0 %v954
        %v989 = vpop.f32.mrf.mxu0
        %v990 = vadd.f32 %v971, %v989
        %991 = vdwg.mxu0
        %v992 = vmax.f32 %v990, 0.0
        %v993 = vld [vmem:[%s9] sm:$0xff]
        %v994 = vld [vmem:[%s9 + $0x8] sm:$0xff]
        %v995 = vld [vmem:[%s9 + $0x10] sm:$0xff]
        %v996 = vld [vmem:[%s9 + $0x18] sm:$0xff]
        %v997 = vld [vmem:[%s10] sm:$0x1]
        %v999 = vsel %vm641, %v992, 0
        %1001 = vmatpush.msra.mxu0 0.0
        %1002 = vmatpush.msra.mxu0 0.0
        %1003 = vmatpush.msra.mxu0 0.0
        %1004 = vmatpush.msra.mxu0 0.0
        %1005 = vmatpush.msra.mxu0 0.0
        %1006 = vmatpush.msra.mxu0 0.0
        %1007 = vmatpush.msra.mxu0 0.0
        %1008 = vmatpush.msra.mxu0 0.0
        %1009 = vmatpush.msra.mxu0 0.0
        %1010 = vmatpush.msra.mxu0 0.0
        %1011 = vmatpush.msra.mxu0 0.0
        %1012 = vmatpush.msra.mxu0 0.0
        %1013 = vmatpush.msra.mxu0 %v996
        %1014 = vmatpush.msra.mxu0 %v995
        %1015 = vmatpush.msra.mxu0 %v994
        %1016 = vmatpush.msra.mxu0 %v993
        %1017 = vmatmul.f32.gmra.mxu0 %v999
        %v1018 = vpop.f32.mrf.mxu0
        %v1019 = vadd.f32 %v997, %v1018
        %1020 = vdwg.mxu0
        %vm1021 = vcmask 16384
        %1022 = vst.msk [vmem:[%s378] sm:$0x1] %vm1021, %v1019
        %s1023 = sand.u32 %s269, 1
        %s1024 = scalar_lea.sflag [#allocation5], %s1023
        %s1025 = sand.u32 %s269, 1
        %s1026 = scalar_lea.vmem [#allocation4], %s1025
        // Predicated region
        $region65: #{cnn_forward.1} parent=63 // pred_check
          %p1027 = pneg %p279
        $region66: #{cnn_forward.1} parent=63 // pred_check_branch
          %1029 = sbr.rel (%p1027) target = $region68
        $region67: #{cnn_forward.1} parent=63 // pred_region
          %1031 = vsyncadd %s1024, 0
          %s1032 = scalar_lea.hbm %s11, %s25
          %s1034 = sshll.u32 %s1026, 4
          %s1035 = int_to_ptr.vmem [resolvable:$true] %s1034
          %s1036 = sshll.u32 %s1032, 4
          %s1037 = int_to_ptr.hbm [resolvable:$true] %s1036
          %1039 = dma.vmem_to_hbm [thread:$0]  %s1035, 16, %s1037, %s1024
        $region68: #{cnn_forward.1} parent=63 // pred_fallthru
          _
      $region64: #{cnn_forward.1} parent=5 // pred_fallthru
        _
      %p1040 = scmp.le.s32.totalorder 2, %s20
      // Predicated region
      $region69: #{cnn_forward.1} parent=5 // pred_check
        %p1041 = pneg %p1040
      $region70: #{cnn_forward.1} parent=5 // pred_check_branch
        %1043 = sbr.rel (%p1041) target = $region72
      $region71: #{cnn_forward.1} parent=5 // pred_region
        %s1044 = ssub.s32 %s20, 2
        // Predicated region
        $region73: #{cnn_forward.1} parent=71 // pred_check
          %p1045 = pneg %p285
        $region74: #{cnn_forward.1} parent=71 // pred_check_branch
          %1047 = sbr.rel (%p1045) target = $region76
        $region75: #{cnn_forward.1} parent=71 // pred_region
          %s1048 = sand.u32 %s270, 1
          %s1049 = scalar_lea.sflag [#allocation5], %s1048
          %s1050 = sand.u32 %s270, 1
          %s1051 = scalar_lea.vmem [#allocation4], %s1050
          %1053 = dma.done %s1049, 16
        $region76: #{cnn_forward.1} parent=71 // pred_fallthru
          _
      $region72: #{cnn_forward.1} parent=5 // pred_fallthru
        _
    $region6: #{cnn_forward.1} parent=1 // loop_footer
      %s24 = sadd.s32 1, %s20
    $region7: #{cnn_forward.1} parent=1 // loop_footer_branch
      %19 = sbr.rel target = $region3
    $region8: #{cnn_forward.1} parent=1 // loop_exit
      _
    %1054 = vsyncpa [#allocation5], 1
    %s1055 = scalar_lea.sflag [#allocation5], 1
    %1056 = vsyncpa %s1055, 1

</llo_original>
